<compile_context>
chip_gen: v6e
topology: v6e:2x2x1
jax: 0.10.0
libtpu: 0.0.40
codegen_flags: <defaults>
</compile_context>

<pallas_src>
import functools

import numpy as np
import jax
import jax.numpy as jnp
from jax.experimental import pallas as pl
from jax.experimental.pallas import tpu as pltpu


# ----------------------------------------------------------------------------
# Pallas kernel: TB windows of one image per grid step.
# ----------------------------------------------------------------------------
def _window_attn_kernel(x_ref, wqkv_ref, bqkv_ref, bias_ref, wproj_ref,
                        bproj_ref, out_ref, attnw_ref, *, num_heads, scale):
    """
    x_ref    : (TB*Np, C)      bf16   TB windows stacked on the row axis
    wqkv_ref : (C, 3C)         bf16
    bqkv_ref : (1, 3C)         f32
    bias_ref : (TB*H, Np, Np)  f32    rel-pos (+shift mask) (+pad-key mask)
    wproj_ref: (C, C)          bf16
    bproj_ref: (1, C)          f32
    out_ref  : (TB*Np, C)      f32
    attnw_ref: (TB*H, Np, Np)  f32    raw (unscaled) q @ k^T logits
    """
    M, C = x_ref.shape
    H = num_heads
    hd = C // H
    Z, Np, _ = bias_ref.shape            # Z = TB * H
    TB = Z // H

    # --- QKV projection on the stacked slab (bf16 MXU, f32 accumulate) -------
    qkv2 = jnp.dot(x_ref[...], wqkv_ref[...],
                   preferred_element_type=jnp.float32) + bqkv_ref[...]
    qkv = qkv2.reshape(TB, Np, 3 * C)    # Np % 8 == 0 -> tile-aligned reshape

    # --- regroup lane-grouped heads into a leading batch dim (TB*H, Np, hd) --
    # Only static lane slices + leading-dim concatenation; no per-head matmuls.
    def heads_to_batch(base):
        parts = [qkv[:, :, base + h * hd: base + (h + 1) * hd][:, None]
                 for h in range(H)]                       # each (TB, 1, Np, hd)
        return jnp.concatenate(parts, axis=1).reshape(Z, Np, hd)

    q = heads_to_batch(0)
    k = heads_to_batch(C)
    v = heads_to_batch(2 * C)

    # --- raw attention logits (returned as-is, so kept in f32) ---------------
    aw = jnp.einsum("znd,zmd->znm", q, k,
                    preferred_element_type=jnp.float32)   # (Z, Np, Np)
    attnw_ref[...] = aw.astype(attnw_ref.dtype)

    # --- scaled + biased softmax (f32 VPU math, EUP reciprocal) --------------
    a = aw * scale + bias_ref[...]
    a = a - jnp.max(a, axis=-1, keepdims=True)
    p = jnp.exp(a)
    p = p * pl.reciprocal(jnp.sum(p, axis=-1, keepdims=True), approx=True)

    # --- attn @ v (bf16 MXU, f32 accumulate) ----------------------------------
    o = jnp.einsum("znm,zmd->znd", p.astype(jnp.bfloat16),
                   v.astype(jnp.bfloat16),
                   preferred_element_type=jnp.float32)    # (Z, Np, hd)

    # --- back to token-major (TB*Np, C) layout and output projection ---------
    o4 = o.reshape(TB, H, Np, hd)                                  # leading split
    o3 = jnp.concatenate([o4[:, h] for h in range(H)], axis=-1)    # (TB, Np, C)
    y = jnp.dot(o3.reshape(M, C).astype(jnp.bfloat16), wproj_ref[...],
                preferred_element_type=jnp.float32) + bproj_ref[...]
    out_ref[...] = y.astype(out_ref.dtype)


# ----------------------------------------------------------------------------
# Wrapper: glue (prompt concat, bias construction, padding) + pallas_call
# ----------------------------------------------------------------------------
def _pick_windows_per_step(nW, H, Np, C, vmem_budget_bytes=24 * 1024 * 1024):
    """Largest divisor of nW whose per-step working set fits a VMEM budget
    (keep the budget conservative so it also fits v7x's 64 MiB VMEM)."""
    hd = C // H
    per_win = 4 * (Np * 3 * C            # qkv intermediate (f32)
                   + 3 * H * Np * hd     # head-batched q/k/v copies
                   + 3 * H * Np * Np     # logits + probs + attn_weight block
                   + 4 * Np * C)         # x/out blocks incl. double buffering
    tb = nW
    while tb > 1 and (nW % tb != 0 or tb * per_win > vmem_budget_bytes):
        tb -= 1
    return max(tb, 1)


def window_attention_forward(x, spa_prompts, params, mask=None,
                             windows_per_step=None,
                             attn_weight_dtype=jnp.float32):
    B_, Nw, C = x.shape
    B, P, _ = spa_prompts.shape
    nW = B_ // B
    H = params["num_heads"]
    hd = C // H
    scale = float(hd) ** -0.5
    N = P + Nw
    Np = ((N + 7) // 8) * 8              # pad token dim to a sublane multiple

    if windows_per_step is None:
        windows_per_step = _pick_windows_per_step(nW, H, Np, C)
    TB = windows_per_step
    assert nW % TB == 0, "windows_per_step must divide the number of windows"
    n_chunks = nW // TB
    steps = B * n_chunks

    # --- prepend prompts to every window, pad tokens, cast to bf16 -----------
    sp = jnp.broadcast_to(spa_prompts[:, None], (B, nW, P, C)).reshape(B_, P, C)
    x_cat = jnp.concatenate([sp, x], axis=1)                     # (B_, N, C)
    x_pad = jnp.pad(x_cat, ((0, 0), (0, Np - N), (0, 0)))        # (B_, Np, C)
    x_flat = x_pad.reshape(steps, TB * Np, C).astype(jnp.bfloat16)

    # --- bias: rel-pos (+ attention mask) (+ key-padding mask), deduped over B
    rel = params["rel_bias_table"][params["rel_index"].reshape(-1)]
    rel = rel.reshape(Nw, Nw, H).transpose(2, 0, 1).astype(jnp.float32)  # (H,Nw,Nw)
    bias = jnp.zeros((nW, H, Np, Np), jnp.float32)
    bias = bias.at[:, :, P:N, P:N].add(rel[None])
    if mask is not None:
        bias = bias.at[:, :, P:N, P:N].add(mask[:, None].astype(jnp.float32))
    if Np > N:
        bias = bias.at[:, :, :, N:].set(-1e9)     # never attend to padded keys
    bias = bias.reshape(n_chunks, TB * H, Np, Np)

    wqkv = params["w_qkv"].astype(jnp.bfloat16)                   # (C, 3C)
    bqkv = params["b_qkv"].reshape(1, 3 * C).astype(jnp.float32)
    wproj = params["w_proj"].astype(jnp.bfloat16)                 # (C, C)
    bproj = params["b_proj"].reshape(1, C).astype(jnp.float32)

    kernel = functools.partial(_window_attn_kernel, num_heads=H, scale=scale)

    y_pad, attnw = pl.pallas_call(
        kernel,
        out_shape=(jax.ShapeDtypeStruct((steps, TB * Np, C), jnp.float32),
                   jax.ShapeDtypeStruct((steps, TB * H, Np, Np),
                                        attn_weight_dtype)),
        grid=(steps,),
        in_specs=[
            pl.BlockSpec((None, TB * Np, C), lambda s: (s, 0, 0)),
            pl.BlockSpec((C, 3 * C), lambda s: (0, 0)),
            pl.BlockSpec((1, 3 * C), lambda s: (0, 0)),
            pl.BlockSpec((None, TB * H, Np, Np),
                         lambda s: (s % n_chunks, 0, 0, 0)),
            pl.BlockSpec((C, C), lambda s: (0, 0)),
            pl.BlockSpec((1, C), lambda s: (0, 0)),
        ],
        out_specs=(pl.BlockSpec((None, TB * Np, C), lambda s: (s, 0, 0)),
                   pl.BlockSpec((None, TB * H, Np, Np),
                                lambda s: (s, 0, 0, 0))),
        compiler_params=pltpu.CompilerParams(
            dimension_semantics=("parallel",),
            vmem_limit_bytes=48 * 1024 * 1024),
    )(x_flat, wqkv, bqkv, bias, wproj, bproj)

    # --- unpad, split off prompts, average prompts over windows --------------
    y = y_pad.reshape(B_, Np, C)[:, :N]
    attn_weight = attnw.reshape(B_, H, Np, Np)[:, :, :N, :N]
    spa_out = y[:, :P].reshape(B, nW, P, C).mean(axis=1)
    x_out = y[:, P:]
    # TODO(synk): attn_drop / proj_drop are 0.0 (eval mode) so dropout is identity here.
    # TODO(synk): attn_weight last dim (Np) is not 128-lane-dense; pad to 128 for
    #             production shapes if the raw-logit output must stay enabled.
    return x_out, attn_weight, spa_out


# ----------------------------------------------------------------------------
# Pure-JAX reference (mirrors the PyTorch forward literally) for verification.
# ----------------------------------------------------------------------------
def reference_forward(x, spa_prompts, params, mask=None):
    B_, Nw, C = x.shape
    B, P, _ = spa_prompts.shape
    nW = B_ // B
    H = params["num_heads"]
    hd = C // H
    scale = float(hd) ** -0.5

    sp = jnp.broadcast_to(spa_prompts[:, None], (B, nW, P, C)).reshape(B_, P, C)
    xc = jnp.concatenate([sp, x], axis=1)
    N = P + Nw

    qkv = xc @ params["w_qkv"] + params["b_qkv"]
    qkv = qkv.reshape(B_, N, 3, H, hd).transpose(2, 0, 3, 1, 4)
    q, k, v = qkv[0], qkv[1], qkv[2]                         # (B_, H, N, hd)

    attn_weight = q @ jnp.swapaxes(k, -2, -1)                # unscaled
    attn = attn_weight * scale

    rel = params["rel_bias_table"][params["rel_index"].reshape(-1)]
    rel = rel.reshape(Nw, Nw, H).transpose(2, 0, 1)
    attn = attn.at[:, :, P:, P:].add(rel[None])
    if mask is not None:
        attn = attn.reshape(B, nW, H, N, N)
        attn = attn.at[:, :, :, P:, P:].add(mask[None, :, None])
        attn = attn.reshape(B_, H, N, N)
    attn = jax.nn.softmax(attn, axis=-1)

    xo = (attn @ v).transpose(0, 2, 1, 3).reshape(B_, N, C)
    xo = xo @ params["w_proj"] + params["b_proj"]
    spa_out = xo[:, :P].reshape(B, nW, P, C).mean(axis=1)
    return xo[:, P:], attn_weight, spa_out


# ----------------------------------------------------------------------------
# Deterministic parameter / buffer construction (matches __init__ shapes).
# ----------------------------------------------------------------------------
def make_params(dim, window_size, num_heads, key):
    ws = window_size
    ks = jax.random.split(key, 5)
    table = 0.02 * jax.random.normal(
        ks[0], ((2 * ws[0] - 1) * (2 * ws[1] - 1), num_heads), jnp.float32)
    w_qkv = 0.05 * jax.random.normal(ks[1], (dim, 3 * dim), jnp.float32)
    b_qkv = 0.05 * jax.random.normal(ks[2], (3 * dim,), jnp.float32)
    w_proj = 0.05 * jax.random.normal(ks[3], (dim, dim), jnp.float32)
    b_proj = 0.05 * jax.random.normal(ks[4], (dim,), jnp.float32)

    # relative_position_index buffer (same math as the PyTorch __init__)
    coords_h = np.arange(ws[0])
    coords_w = np.arange(ws[1])
    coords = np.stack(np.meshgrid(coords_h, coords_w, indexing="ij"))
    coords_flatten = coords.reshape(2, -1)
    relative_coords = coords_flatten[:, :, None] - coords_flatten[:, None, :]
    relative_coords = relative_coords.transpose(1, 2, 0).copy()
    relative_coords[:, :, 0] += ws[0] - 1
    relative_coords[:, :, 1] += ws[1] - 1
    relative_coords[:, :, 0] *= 2 * ws[1] - 1
    rel_index = relative_coords.sum(-1)

    return {
        "num_heads": num_heads,
        "rel_bias_table": table,
        "rel_index": jnp.asarray(rel_index, jnp.int32),
        "w_qkv": w_qkv, "b_qkv": b_qkv,
        "w_proj": w_proj, "b_proj": b_proj,
    }


if __name__ == "__main__":
    # dim=32, heads=4 (head_dim=8), window 4x4 (Wh*Ww=16), prompts_len=4,
    # B=2 images, nW=2 windows each -> B_=4, N=20 (padded to 24 inside).
    dim, num_heads = 32, 4
    window_size = (4, 4)
    prompts_len = 4
    B, nW = 2, 2
    B_ = B * nW
    Nw = window_size[0] * window_size[1]

    key = jax.random.PRNGKey(0)
    kx, kp, kparams, km = jax.random.split(key, 4)
    x = jax.random.normal(kx, (B_, Nw, dim), jnp.float32)
    spa_prompts = jax.random.normal(kp, (B, prompts_len, dim), jnp.float32)
    params = make_params(dim, window_size, num_heads, kparams)

    # tolerances: kernel uses bf16 MXU operands with f32 accumulate vs f32 ref
    TOL = dict(rtol=2e-2, atol=2e-2)

    # ---- no-mask (regular window) path ----
    x_out, attn_w, spa_out = window_attention_forward(x, spa_prompts, params, mask=None)
    jax.block_until_ready((x_out, attn_w, spa_out))
    rx, rattn, rsp = reference_forward(x, spa_prompts, params, mask=None)
    np.testing.assert_allclose(np.asarray(x_out), np.asarray(rx), **TOL)
    np.testing.assert_allclose(np.asarray(attn_w), np.asarray(rattn), **TOL)
    np.testing.assert_allclose(np.asarray(spa_out), np.asarray(rsp), **TOL)

    # ---- shifted-window mask path ----
    mask = jnp.where(jax.random.bernoulli(km, 0.3, (nW, Nw, Nw)),
                     -100.0, 0.0).astype(jnp.float32)
    x_out, attn_w, spa_out = window_attention_forward(x, spa_prompts, params, mask=mask)
    jax.block_until_ready((x_out, attn_w, spa_out))
    rx, rattn, rsp = reference_forward(x, spa_prompts, params, mask=mask)
    np.testing.assert_allclose(np.asarray(x_out), np.asarray(rx), **TOL)
    np.testing.assert_allclose(np.asarray(attn_w), np.asarray(rattn), **TOL)
    np.testing.assert_allclose(np.asarray(spa_out), np.asarray(rsp), **TOL)

    print("KERNEL_OK")
</pallas_src>

<mosaic_0001>
module attributes {stable_mosaic.version = 11 : i64} {
  func.func @_window_attn_kernel(%arg0: i32, %arg1: memref<1x48x32xbf16, #tpu.memory_space<vmem>>, %arg2: memref<32x96xbf16, #tpu.memory_space<vmem>>, %arg3: memref<1x96xf32, #tpu.memory_space<vmem>>, %arg4: memref<1x8x24x24xf32, #tpu.memory_space<vmem>>, %arg5: memref<32x32xbf16, #tpu.memory_space<vmem>>, %arg6: memref<1x32xf32, #tpu.memory_space<vmem>>, %arg7: memref<1x48x32xf32, #tpu.memory_space<vmem>>, %arg8: memref<1x8x24x24xf32, #tpu.memory_space<vmem>>) attributes {dimension_semantics = [#tpu.dimension_semantics<parallel>], iteration_bounds = array<i64: 2>, scalar_prefetch = 0 : i64, scratch_operands = 0 : i64, tpu.core_type = #tpu.core_type<tc>, window_params = [{transform_indices = @transform_0, window_bounds = array<i64: 1, 48, 32>}, {pipeline_mode = #tpu.pipeline_mode<synchronous>, transform_indices = @transform_1, window_bounds = array<i64: 32, 96>}, {pipeline_mode = #tpu.pipeline_mode<synchronous>, transform_indices = @transform_2, window_bounds = array<i64: 1, 96>}, {transform_indices = @transform_3, window_bounds = array<i64: 1, 8, 24, 24>}, {pipeline_mode = #tpu.pipeline_mode<synchronous>, transform_indices = @transform_4, window_bounds = array<i64: 32, 32>}, {pipeline_mode = #tpu.pipeline_mode<synchronous>, transform_indices = @transform_5, window_bounds = array<i64: 1, 32>}, {transform_indices = @transform_6, window_bounds = array<i64: 1, 48, 32>}, {transform_indices = @transform_7, window_bounds = array<i64: 1, 8, 24, 24>}]} {
    %c0 = arith.constant 0 : index
    %c0_0 = arith.constant 0 : index
    %c0_1 = arith.constant 0 : index
    %0 = vector.load %arg1[%c0, %c0_0, %c0_1] : memref<1x48x32xbf16, #tpu.memory_space<vmem>>, vector<1x48x32xbf16>
    %1 = vector.shape_cast %0 : vector<1x48x32xbf16> to vector<48x32xbf16>
    %c0_2 = arith.constant 0 : index
    %c0_3 = arith.constant 0 : index
    %2 = vector.load %arg2[%c0_2, %c0_3] : memref<32x96xbf16, #tpu.memory_space<vmem>>, vector<32x96xbf16>
    %cst = arith.constant dense<0.000000e+00> : vector<48x96xf32>
    %3 = tpu.matmul %1, %2, %cst {dimension_numbers = #tpu.dot_dimension_numbers<[1], [0], [0], [1], [0, 0, 1, 1], [], []>} : vector<48x32xbf16>, vector<32x96xbf16>, vector<48x96xf32> -> vector<48x96xf32>
    %c0_4 = arith.constant 0 : index
    %c0_5 = arith.constant 0 : index
    %4 = vector.load %arg3[%c0_4, %c0_5] : memref<1x96xf32, #tpu.memory_space<vmem>>, vector<1x96xf32>
    %5 = vector.broadcast %4 : vector<1x96xf32> to vector<48x96xf32>
    %6 = arith.addf %3, %5 : vector<48x96xf32>
    %7 = vector.shape_cast %6 : vector<48x96xf32> to vector<2x24x96xf32>
    %8 = vector.extract_strided_slice %7 {offsets = [0, 0, 0], sizes = [2, 24, 8], strides = [1, 1, 1]} : vector<2x24x96xf32> to vector<2x24x8xf32>
    %9 = vector.shape_cast %8 : vector<2x24x8xf32> to vector<2x1x24x8xf32>
    %10 = vector.extract_strided_slice %7 {offsets = [0, 0, 8], sizes = [2, 24, 8], strides = [1, 1, 1]} : vector<2x24x96xf32> to vector<2x24x8xf32>
    %11 = vector.shape_cast %10 : vector<2x24x8xf32> to vector<2x1x24x8xf32>
    %12 = vector.extract_strided_slice %7 {offsets = [0, 0, 16], sizes = [2, 24, 8], strides = [1, 1, 1]} : vector<2x24x96xf32> to vector<2x24x8xf32>
    %13 = vector.shape_cast %12 : vector<2x24x8xf32> to vector<2x1x24x8xf32>
    %14 = vector.extract_strided_slice %7 {offsets = [0, 0, 24], sizes = [2, 24, 8], strides = [1, 1, 1]} : vector<2x24x96xf32> to vector<2x24x8xf32>
    %15 = vector.shape_cast %14 : vector<2x24x8xf32> to vector<2x1x24x8xf32>
    %16 = tpu.concatenate %9, %11, %13, %15 in 1 : vector<2x1x24x8xf32>, vector<2x1x24x8xf32>, vector<2x1x24x8xf32>, vector<2x1x24x8xf32> -> vector<2x4x24x8xf32>
    %17 = vector.shape_cast %16 : vector<2x4x24x8xf32> to vector<8x24x8xf32>
    %18 = vector.extract_strided_slice %7 {offsets = [0, 0, 32], sizes = [2, 24, 8], strides = [1, 1, 1]} : vector<2x24x96xf32> to vector<2x24x8xf32>
    %19 = vector.shape_cast %18 : vector<2x24x8xf32> to vector<2x1x24x8xf32>
    %20 = vector.extract_strided_slice %7 {offsets = [0, 0, 40], sizes = [2, 24, 8], strides = [1, 1, 1]} : vector<2x24x96xf32> to vector<2x24x8xf32>
    %21 = vector.shape_cast %20 : vector<2x24x8xf32> to vector<2x1x24x8xf32>
    %22 = vector.extract_strided_slice %7 {offsets = [0, 0, 48], sizes = [2, 24, 8], strides = [1, 1, 1]} : vector<2x24x96xf32> to vector<2x24x8xf32>
    %23 = vector.shape_cast %22 : vector<2x24x8xf32> to vector<2x1x24x8xf32>
    %24 = vector.extract_strided_slice %7 {offsets = [0, 0, 56], sizes = [2, 24, 8], strides = [1, 1, 1]} : vector<2x24x96xf32> to vector<2x24x8xf32>
    %25 = vector.shape_cast %24 : vector<2x24x8xf32> to vector<2x1x24x8xf32>
    %26 = tpu.concatenate %19, %21, %23, %25 in 1 : vector<2x1x24x8xf32>, vector<2x1x24x8xf32>, vector<2x1x24x8xf32>, vector<2x1x24x8xf32> -> vector<2x4x24x8xf32>
    %27 = vector.shape_cast %26 : vector<2x4x24x8xf32> to vector<8x24x8xf32>
    %28 = vector.extract_strided_slice %7 {offsets = [0, 0, 64], sizes = [2, 24, 8], strides = [1, 1, 1]} : vector<2x24x96xf32> to vector<2x24x8xf32>
    %29 = vector.shape_cast %28 : vector<2x24x8xf32> to vector<2x1x24x8xf32>
    %30 = vector.extract_strided_slice %7 {offsets = [0, 0, 72], sizes = [2, 24, 8], strides = [1, 1, 1]} : vector<2x24x96xf32> to vector<2x24x8xf32>
    %31 = vector.shape_cast %30 : vector<2x24x8xf32> to vector<2x1x24x8xf32>
    %32 = vector.extract_strided_slice %7 {offsets = [0, 0, 80], sizes = [2, 24, 8], strides = [1, 1, 1]} : vector<2x24x96xf32> to vector<2x24x8xf32>
    %33 = vector.shape_cast %32 : vector<2x24x8xf32> to vector<2x1x24x8xf32>
    %34 = vector.extract_strided_slice %7 {offsets = [0, 0, 88], sizes = [2, 24, 8], strides = [1, 1, 1]} : vector<2x24x96xf32> to vector<2x24x8xf32>
    %35 = vector.shape_cast %34 : vector<2x24x8xf32> to vector<2x1x24x8xf32>
    %36 = tpu.concatenate %29, %31, %33, %35 in 1 : vector<2x1x24x8xf32>, vector<2x1x24x8xf32>, vector<2x1x24x8xf32>, vector<2x1x24x8xf32> -> vector<2x4x24x8xf32>
    %37 = vector.shape_cast %36 : vector<2x4x24x8xf32> to vector<8x24x8xf32>
    "tpu.trace_start"() <{level = 10 : i32, message = "znd,zmd->znm"}> : () -> ()
    %cst_6 = arith.constant dense<0.000000e+00> : vector<8x24x24xf32>
    %38 = tpu.matmul %17, %27, %cst_6 {dimension_numbers = #tpu.dot_dimension_numbers<[2], [2], [1], [1], [0, 0, 0, 1, 1, 1], [0], [0]>} : vector<8x24x8xf32>, vector<8x24x8xf32>, vector<8x24x24xf32> -> vector<8x24x24xf32>
    "tpu.trace_stop"() : () -> ()
    %c0_7 = arith.constant 0 : index
    %c0_8 = arith.constant 0 : index
    %c0_9 = arith.constant 0 : index
    %c0_10 = arith.constant 0 : index
    %39 = vector.load %arg8[%c0_7, %c0_8, %c0_9, %c0_10] : memref<1x8x24x24xf32, #tpu.memory_space<vmem>>, vector<1x8x24x24xf32>
    %40 = vector.shape_cast %39 : vector<1x8x24x24xf32> to vector<8x24x24xf32>
    %41 = vector.shape_cast %38 : vector<8x24x24xf32> to vector<1x8x24x24xf32>
    tpu.vector_store %arg8[%c0_7, %c0_8, %c0_9, %c0_10], %41 {strides = array<i32>} : memref<1x8x24x24xf32, #tpu.memory_space<vmem>>, vector<1x8x24x24xf32>,
    %cst_11 = arith.constant 0.353553385 : f32
    %42 = vector.broadcast %cst_11 : f32 to vector<8x24x24xf32>
    %43 = arith.mulf %38, %42 : vector<8x24x24xf32>
    %c0_12 = arith.constant 0 : index
    %c0_13 = arith.constant 0 : index
    %c0_14 = arith.constant 0 : index
    %c0_15 = arith.constant 0 : index
    %44 = vector.load %arg4[%c0_12, %c0_13, %c0_14, %c0_15] : memref<1x8x24x24xf32, #tpu.memory_space<vmem>>, vector<1x8x24x24xf32>
    %45 = vector.shape_cast %44 : vector<1x8x24x24xf32> to vector<8x24x24xf32>
    %46 = arith.addf %43, %45 : vector<8x24x24xf32>
    %cst_16 = arith.constant dense<0xFF800000> : vector<8x24xf32>
    %47 = vector.multi_reduction <maximumf>, %46, %cst_16 [2] : vector<8x24x24xf32> to vector<8x24xf32>
    %48 = vector.shape_cast %47 : vector<8x24xf32> to vector<8x24x1xf32>
    %49 = vector.broadcast %48 : vector<8x24x1xf32> to vector<8x24x24xf32>
    %50 = arith.subf %46, %49 : vector<8x24x24xf32>
    %51 = math.exp %50 : vector<8x24x24xf32>
    %cst_17 = arith.constant dense<0.000000e+00> : vector<8x24xf32>
    %52 = vector.multi_reduction <add>, %51, %cst_17 [2] : vector<8x24x24xf32> to vector<8x24xf32>
    %53 = vector.shape_cast %52 : vector<8x24xf32> to vector<8x24x1xf32>
    %54 = tpu.reciprocal %53 {approx = true} : vector<8x24x1xf32> -> vector<8x24x1xf32>
    %55 = vector.broadcast %54 : vector<8x24x1xf32> to vector<8x24x24xf32>
    %56 = arith.mulf %51, %55 : vector<8x24x24xf32>
    %57 = arith.truncf %56 : vector<8x24x24xf32> to vector<8x24x24xbf16>
    %58 = arith.truncf %37 : vector<8x24x8xf32> to vector<8x24x8xbf16>
    "tpu.trace_start"() <{level = 10 : i32, message = "znm,zmd->znd"}> : () -> ()
    %cst_18 = arith.constant dense<0.000000e+00> : vector<8x24x8xf32>
    %59 = tpu.matmul %57, %58, %cst_18 {dimension_numbers = #tpu.dot_dimension_numbers<[2], [1], [1], [2], [0, 0, 0, 1, 1, 2], [0], [0]>} : vector<8x24x24xbf16>, vector<8x24x8xbf16>, vector<8x24x8xf32> -> vector<8x24x8xf32>
    "tpu.trace_stop"() : () -> ()
    %60 = vector.shape_cast %59 : vector<8x24x8xf32> to vector<2x4x24x8xf32>
    %61 = vector.extract_strided_slice %60 {offsets = [0, 0, 0, 0], sizes = [2, 1, 24, 8], strides = [1, 1, 1, 1]} : vector<2x4x24x8xf32> to vector<2x1x24x8xf32>
    %62 = vector.shape_cast %61 : vector<2x1x24x8xf32> to vector<2x24x8xf32>
    %63 = vector.extract_strided_slice %60 {offsets = [0, 1, 0, 0], sizes = [2, 1, 24, 8], strides = [1, 1, 1, 1]} : vector<2x4x24x8xf32> to vector<2x1x24x8xf32>
    %64 = vector.shape_cast %63 : vector<2x1x24x8xf32> to vector<2x24x8xf32>
    %65 = vector.extract_strided_slice %60 {offsets = [0, 2, 0, 0], sizes = [2, 1, 24, 8], strides = [1, 1, 1, 1]} : vector<2x4x24x8xf32> to vector<2x1x24x8xf32>
    %66 = vector.shape_cast %65 : vector<2x1x24x8xf32> to vector<2x24x8xf32>
    %67 = vector.extract_strided_slice %60 {offsets = [0, 3, 0, 0], sizes = [2, 1, 24, 8], strides = [1, 1, 1, 1]} : vector<2x4x24x8xf32> to vector<2x1x24x8xf32>
    %68 = vector.shape_cast %67 : vector<2x1x24x8xf32> to vector<2x24x8xf32>
    %69 = tpu.concatenate %62, %64, %66, %68 in 2 : vector<2x24x8xf32>, vector<2x24x8xf32>, vector<2x24x8xf32>, vector<2x24x8xf32> -> vector<2x24x32xf32>
    %70 = vector.shape_cast %69 : vector<2x24x32xf32> to vector<48x32xf32>
    %71 = arith.truncf %70 : vector<48x32xf32> to vector<48x32xbf16>
    %c0_19 = arith.constant 0 : index
    %c0_20 = arith.constant 0 : index
    %72 = vector.load %arg5[%c0_19, %c0_20] : memref<32x32xbf16, #tpu.memory_space<vmem>>, vector<32x32xbf16>
    %cst_21 = arith.constant dense<0.000000e+00> : vector<48x32xf32>
    %73 = tpu.matmul %71, %72, %cst_21 {dimension_numbers = #tpu.dot_dimension_numbers<[1], [0], [0], [1], [0, 0, 1, 1], [], []>} : vector<48x32xbf16>, vector<32x32xbf16>, vector<48x32xf32> -> vector<48x32xf32>
    %c0_22 = arith.constant 0 : index
    %c0_23 = arith.constant 0 : index
    %74 = vector.load %arg6[%c0_22, %c0_23] : memref<1x32xf32, #tpu.memory_space<vmem>>, vector<1x32xf32>
    %75 = vector.broadcast %74 : vector<1x32xf32> to vector<48x32xf32>
    %76 = arith.addf %73, %75 : vector<48x32xf32>
    %c0_24 = arith.constant 0 : index
    %c0_25 = arith.constant 0 : index
    %c0_26 = arith.constant 0 : index
    %77 = vector.load %arg7[%c0_24, %c0_25, %c0_26] : memref<1x48x32xf32, #tpu.memory_space<vmem>>, vector<1x48x32xf32>
    %78 = vector.shape_cast %77 : vector<1x48x32xf32> to vector<48x32xf32>
    %79 = vector.shape_cast %76 : vector<48x32xf32> to vector<1x48x32xf32>
    tpu.vector_store %arg7[%c0_24, %c0_25, %c0_26], %79 {strides = array<i32>} : memref<1x48x32xf32, #tpu.memory_space<vmem>>, vector<1x48x32xf32>,
    return
  }
  func.func @transform_0(%arg0: i32) -> (i32, i32, i32) {
    %c0_i32 = arith.constant 0 : i32
    %c0_i32_0 = arith.constant 0 : i32
    %c0_i32_1 = arith.constant 0 : i32
    return %arg0, %c0_i32, %c0_i32_0 : i32, i32, i32
  }
  func.func @transform_1(%arg0: i32) -> (i32, i32) {
    %c0_i32 = arith.constant 0 : i32
    %c0_i32_0 = arith.constant 0 : i32
    %c0_i32_1 = arith.constant 0 : i32
    return %c0_i32, %c0_i32_0 : i32, i32
  }
  func.func @transform_2(%arg0: i32) -> (i32, i32) {
    %c0_i32 = arith.constant 0 : i32
    %c0_i32_0 = arith.constant 0 : i32
    %c0_i32_1 = arith.constant 0 : i32
    return %c0_i32, %c0_i32_0 : i32, i32
  }
  func.func @transform_3(%arg0: i32) -> (i32, i32, i32, i32) {
    %c1_i32 = arith.constant 1 : i32
    %c0_i32 = arith.constant 0 : i32
    %0 = arith.cmpi eq, %c1_i32, %c0_i32 : i32
    %c1_i32_0 = arith.constant 1 : i32
    %1 = arith.select %0, %c1_i32_0, %c1_i32 : i32
    %2 = arith.remsi %arg0, %1 : i32
    %c0_i32_1 = arith.constant 0 : i32
    %3 = arith.cmpi ne, %2, %c0_i32_1 : i32
    %c0_i32_2 = arith.constant 0 : i32
    %4 = arith.cmpi slt, %2, %c0_i32_2 : i32
    %c0_i32_3 = arith.constant 0 : i32
    %5 = arith.cmpi slt, %1, %c0_i32_3 : i32
    %6 = arith.xori %4, %5 : i1
    %7 = arith.andi %6, %3 : i1
    %8 = arith.addi %2, %1 : i32
    %9 = arith.select %7, %8, %2 : i32
    %c0_i32_4 = arith.constant 0 : i32
    %c0_i32_5 = arith.constant 0 : i32
    %c0_i32_6 = arith.constant 0 : i32
    %c0_i32_7 = arith.constant 0 : i32
    return %9, %c0_i32_4, %c0_i32_5, %c0_i32_6 : i32, i32, i32, i32
  }
  func.func @transform_4(%arg0: i32) -> (i32, i32) {
    %c0_i32 = arith.constant 0 : i32
    %c0_i32_0 = arith.constant 0 : i32
    %c0_i32_1 = arith.constant 0 : i32
    return %c0_i32, %c0_i32_0 : i32, i32
  }
  func.func @transform_5(%arg0: i32) -> (i32, i32) {
    %c0_i32 = arith.constant 0 : i32
    %c0_i32_0 = arith.constant 0 : i32
    %c0_i32_1 = arith.constant 0 : i32
    return %c0_i32, %c0_i32_0 : i32, i32
  }
  func.func @transform_6(%arg0: i32) -> (i32, i32, i32) {
    %c0_i32 = arith.constant 0 : i32
    %c0_i32_0 = arith.constant 0 : i32
    %c0_i32_1 = arith.constant 0 : i32
    return %arg0, %c0_i32, %c0_i32_0 : i32, i32, i32
  }
  func.func @transform_7(%arg0: i32) -> (i32, i32, i32, i32) {
    %c0_i32 = arith.constant 0 : i32
    %c0_i32_0 = arith.constant 0 : i32
    %c0_i32_1 = arith.constant 0 : i32
    %c0_i32_2 = arith.constant 0 : i32
    return %arg0, %c0_i32, %c0_i32_0, %c0_i32_1 : i32, i32, i32, i32
  }
}

</mosaic_0001>

<llo_original>
// kernel: tpu_custom_call.1
$region0: #{tpu_custom_call.1}
  #allocation0 [shape = 'u32[]', space=smem, size = 0x4, offset = 0x4, fixed_abs, tag = 'smem constant byte address 0x4 - core index']
  #allocation1 [shape = 'u32[144,128]{1,0:T(1,128)}', space=vmem, size = 0x12000, scoped, tag = 'internal scratch']
  %s0 = inlined_call_operand.vmem [shape: bf16[2,48,32], index: 0, kind: input, shape index: {}]
  %s1 = inlined_call_operand.vmem [shape: bf16[32,96], index: 1, kind: input, shape index: {}]
  %s2 = inlined_call_operand.vmem [shape: f32[1,96], index: 2, kind: input, shape index: {}]
  %s3 = inlined_call_operand.hbm [shape: f32[1,8,24,24], index: 3, kind: input, shape index: {}]
  %s4 = inlined_call_operand.vmem [shape: bf16[32,32], index: 4, kind: input, shape index: {}]
  %s5 = inlined_call_operand.vmem [shape: f32[1,32], index: 5, kind: input, shape index: {}]
  %s6 = inlined_call_operand.vmem [shape: f32[2,48,32], index: 6, kind: output, shape index: {0}]
  %s7 = inlined_call_operand.hbm [shape: f32[2,8,24,24], index: 7, kind: output, shape index: {1}]
  %8 = xla_tuple %s6, %s7
  %s9 = sld [smem:[#allocation0]]
  $region69: #{tpu_custom_call.1} parent=0
    _
  %s11 = ssub.s32 1, %s9
  %s12 = scalar_select 0, %s11, %s9
  $region1: #{tpu_custom_call.1} parent=0
    #allocation2 [shape = 'u8[98304]{0}', space=vmem, size = 0x18000, scoped, tag = 'input window, operand 3, single buffered']
    #allocation3 [shape = 's32[2]{0}', space=sflag, size = 0x8, scoped, tag = 'scoped memory for tpu_custom_call.1']
    #allocation4 [shape = 's32[2]{0}', space=sflag, size = 0x8, scoped, tag = 'scoped memory for tpu_custom_call.1']
    #allocation5 [shape = 'u8[196608]{0}', space=vmem, size = 0x30000, scoped, tag = 'output window, operand 1']
    %13 = vsyncpa [#allocation3], 0
    %14 = vsyncpa [#allocation4], 0
    %s15 = scalar_lea.sflag [#allocation4], 1
    %16 = vsyncpa %s15, 0
    loop: start=0, step=1, limit=4
    $region2: #{tpu_custom_call.1} parent=1 // loop_pre_header
      _
    $region3: #{tpu_custom_call.1} parent=1 // loop_header
      %s18 = sphi 0, %s22
      %p19 = scmp.ge.s32.totalorder %s18, 4
      %s28 = sphi 0, %s30
      %s31 = sphi 0, %s28
      %s32 = sphi 0, %s31
      %s48 = sphi 0, %s32
      %s52 = sphi 0, %s52
      %s54 = sphi 0, %s52
      %s55 = sphi 0, %s54
      %s69 = sphi 0, %s55
      %s73 = sphi 0, %s73
      %s75 = sphi 0, %s73
      %s76 = sphi 0, %s75
      %s90 = sphi 0, %s76
      %s94 = sphi 0, %s94
      %s96 = sphi 0, %s94
      %s97 = sphi 0, %s96
      %s111 = sphi 0, %s97
      %s115 = sphi 0, %s115
      %s117 = sphi 0, %s115
      %s118 = sphi 0, %s117
      %s132 = sphi 0, %s118
      %s136 = sphi 0, %s136
      %s138 = sphi 0, %s136
      %s139 = sphi 0, %s138
      %s153 = sphi 0, %s139
      %s159 = sphi 0, %s161
      %s162 = sphi 0, %s159
      %s163 = sphi 0, %s162
      %s179 = sphi 0, %s163
      %s185 = sphi 0, %s187
      %s188 = sphi 0, %s185
      %s189 = sphi 0, %s188
      %s205 = sphi 0, %s189
    $region4: #{tpu_custom_call.1} parent=1 // loop_header_branch
      %21 = sbr.rel (%p19) target = $region8
    $region5: #{tpu_custom_call.1} parent=1 // loop_body
      %s23 = ssub.s32 %s18, 1
      %s24 = ssub.s32 %s18, 2
      %s25 = sadd.s32 %s18, 1
      %s26 = ssub.s32 %s18, %s25
      %p27 = scmp.eq.s32.totalorder %s26, 0
      %s29 = sadd.s32 %s28, 1
      %s30 = scalar_select %p27, %s28, %s29
      %p33 = pneg %p27
      %p34 = scmp.eq.s32.totalorder %s18, 1
      %p35 = por %p33, %p34
      %p36 = scmp.ne.s32.totalorder %s28, %s31
      %p37 = scmp.eq.s32.totalorder %s18, 0
      %p38 = por %p36, %p37
      %p39 = scmp.ne.s32.totalorder %s28, %s31
      %p40 = scmp.eq.s32.totalorder %s23, 1
      %p41 = por %p39, %p40
      %p42 = scmp.ne.s32.totalorder %s31, %s32
      %p43 = scmp.eq.s32.totalorder %s23, 0
      %p44 = por %p42, %p43
      %p45 = scmp.ne.s32.totalorder %s31, %s32
      %p46 = scmp.eq.s32.totalorder %s24, 1
      %p47 = por %p45, %p46
      %p49 = scmp.ne.s32.totalorder %s32, %s48
      %p50 = scmp.eq.s32.totalorder %s24, 0
      %p51 = por %p49, %p50
      %s53 = sadd.s32 %s52, 1
      %p56 = scmp.eq.s32.totalorder %s18, 1
      %p57 = scmp.ne.s32.totalorder %s52, %s54
      %p58 = scmp.eq.s32.totalorder %s18, 0
      %p59 = por %p57, %p58
      %p60 = scmp.ne.s32.totalorder %s52, %s54
      %p61 = scmp.eq.s32.totalorder %s23, 1
      %p62 = por %p60, %p61
      %p63 = scmp.ne.s32.totalorder %s54, %s55
      %p64 = scmp.eq.s32.totalorder %s23, 0
      %p65 = por %p63, %p64
      %p66 = scmp.ne.s32.totalorder %s54, %s55
      %p67 = scmp.eq.s32.totalorder %s24, 1
      %p68 = por %p66, %p67
      %p70 = scmp.ne.s32.totalorder %s55, %s69
      %p71 = scmp.eq.s32.totalorder %s24, 0
      %p72 = por %p70, %p71
      %s74 = sadd.s32 %s73, 1
      %p77 = scmp.eq.s32.totalorder %s18, 1
      %p78 = scmp.ne.s32.totalorder %s73, %s75
      %p79 = scmp.eq.s32.totalorder %s18, 0
      %p80 = por %p78, %p79
      %p81 = scmp.ne.s32.totalorder %s73, %s75
      %p82 = scmp.eq.s32.totalorder %s23, 1
      %p83 = por %p81, %p82
      %p84 = scmp.ne.s32.totalorder %s75, %s76
      %p85 = scmp.eq.s32.totalorder %s23, 0
      %p86 = por %p84, %p85
      %p87 = scmp.ne.s32.totalorder %s75, %s76
      %p88 = scmp.eq.s32.totalorder %s24, 1
      %p89 = por %p87, %p88
      %p91 = scmp.ne.s32.totalorder %s76, %s90
      %p92 = scmp.eq.s32.totalorder %s24, 0
      %p93 = por %p91, %p92
      %s95 = sadd.s32 %s94, 1
      %p98 = scmp.eq.s32.totalorder %s18, 1
      %p99 = scmp.ne.s32.totalorder %s94, %s96
      %p100 = scmp.eq.s32.totalorder %s18, 0
      %p101 = por %p99, %p100
      %p102 = scmp.ne.s32.totalorder %s94, %s96
      %p103 = scmp.eq.s32.totalorder %s23, 1
      %p104 = por %p102, %p103
      %p105 = scmp.ne.s32.totalorder %s96, %s97
      %p106 = scmp.eq.s32.totalorder %s23, 0
      %p107 = por %p105, %p106
      %p108 = scmp.ne.s32.totalorder %s96, %s97
      %p109 = scmp.eq.s32.totalorder %s24, 1
      %p110 = por %p108, %p109
      %p112 = scmp.ne.s32.totalorder %s97, %s111
      %p113 = scmp.eq.s32.totalorder %s24, 0
      %p114 = por %p112, %p113
      %s116 = sadd.s32 %s115, 1
      %p119 = scmp.eq.s32.totalorder %s18, 1
      %p120 = scmp.ne.s32.totalorder %s115, %s117
      %p121 = scmp.eq.s32.totalorder %s18, 0
      %p122 = por %p120, %p121
      %p123 = scmp.ne.s32.totalorder %s115, %s117
      %p124 = scmp.eq.s32.totalorder %s23, 1
      %p125 = por %p123, %p124
      %p126 = scmp.ne.s32.totalorder %s117, %s118
      %p127 = scmp.eq.s32.totalorder %s23, 0
      %p128 = por %p126, %p127
      %p129 = scmp.ne.s32.totalorder %s117, %s118
      %p130 = scmp.eq.s32.totalorder %s24, 1
      %p131 = por %p129, %p130
      %p133 = scmp.ne.s32.totalorder %s118, %s132
      %p134 = scmp.eq.s32.totalorder %s24, 0
      %p135 = por %p133, %p134
      %s137 = sadd.s32 %s136, 1
      %p140 = scmp.eq.s32.totalorder %s18, 1
      %p141 = scmp.ne.s32.totalorder %s136, %s138
      %p142 = scmp.eq.s32.totalorder %s18, 0
      %p143 = por %p141, %p142
      %p144 = scmp.ne.s32.totalorder %s136, %s138
      %p145 = scmp.eq.s32.totalorder %s23, 1
      %p146 = por %p144, %p145
      %p147 = scmp.ne.s32.totalorder %s138, %s139
      %p148 = scmp.eq.s32.totalorder %s23, 0
      %p149 = por %p147, %p148
      %p150 = scmp.ne.s32.totalorder %s138, %s139
      %p151 = scmp.eq.s32.totalorder %s24, 1
      %p152 = por %p150, %p151
      %p154 = scmp.ne.s32.totalorder %s139, %s153
      %p155 = scmp.eq.s32.totalorder %s24, 0
      %p156 = por %p154, %p155
      %s157 = ssub.s32 %s18, %s25
      %p158 = scmp.eq.s32.totalorder %s157, 0
      %s160 = sadd.s32 %s159, 1
      %s161 = scalar_select %p158, %s159, %s160
      %p164 = pneg %p158
      %p165 = scmp.eq.s32.totalorder %s18, 1
      %p166 = por %p164, %p165
      %p167 = scmp.ne.s32.totalorder %s159, %s162
      %p168 = scmp.eq.s32.totalorder %s18, 0
      %p169 = por %p167, %p168
      %p170 = scmp.ne.s32.totalorder %s159, %s162
      %p171 = scmp.eq.s32.totalorder %s23, 1
      %p172 = por %p170, %p171
      %p173 = scmp.ne.s32.totalorder %s162, %s163
      %p174 = scmp.eq.s32.totalorder %s23, 0
      %p175 = por %p173, %p174
      %p176 = scmp.ne.s32.totalorder %s162, %s163
      %p177 = scmp.eq.s32.totalorder %s24, 1
      %p178 = por %p176, %p177
      %p180 = scmp.ne.s32.totalorder %s163, %s179
      %p181 = scmp.eq.s32.totalorder %s24, 0
      %p182 = por %p180, %p181
      %s183 = ssub.s32 %s18, %s25
      %p184 = scmp.eq.s32.totalorder %s183, 0
      %s186 = sadd.s32 %s185, 1
      %s187 = scalar_select %p184, %s185, %s186
      %p190 = pneg %p184
      %p191 = scmp.eq.s32.totalorder %s18, 1
      %p192 = por %p190, %p191
      %p193 = scmp.ne.s32.totalorder %s185, %s188
      %p194 = scmp.eq.s32.totalorder %s18, 0
      %p195 = por %p193, %p194
      %p196 = scmp.ne.s32.totalorder %s185, %s188
      %p197 = scmp.eq.s32.totalorder %s23, 1
      %p198 = por %p196, %p197
      %p199 = scmp.ne.s32.totalorder %s188, %s189
      %p200 = scmp.eq.s32.totalorder %s23, 0
      %p201 = por %p199, %p200
      %p202 = scmp.ne.s32.totalorder %s188, %s189
      %p203 = scmp.eq.s32.totalorder %s24, 1
      %p204 = por %p202, %p203
      %p206 = scmp.ne.s32.totalorder %s189, %s205
      %p207 = scmp.eq.s32.totalorder %s24, 0
      %p208 = por %p206, %p207
      %p209 = scmp.le.s32.totalorder 1, %s18
      %p210 = scmp.lt.s32.totalorder %s18, 3
      %p211 = pnand %p209, %p210
      %p212 = pneg %p211
      // Predicated region
      $region9: #{tpu_custom_call.1} parent=5 // pred_check
        _
      $region10: #{tpu_custom_call.1} parent=5 // pred_check_branch
        %214 = sbr.rel (%p211) target = $region12
      $region11: #{tpu_custom_call.1} parent=5 // pred_region
        %s215 = ssub.s32 %s18, 1
        // Predicated region
        $region13: #{tpu_custom_call.1} parent=11 // pred_check
          %p216 = pneg %p65
        $region14: #{tpu_custom_call.1} parent=11 // pred_check_branch
          %218 = sbr.rel (%p216) target = $region16
        $region15: #{tpu_custom_call.1} parent=11 // pred_region
          _
        $region16: #{tpu_custom_call.1} parent=11 // pred_fallthru
          _
        // Predicated region
        $region17: #{tpu_custom_call.1} parent=11 // pred_check
          %p219 = pneg %p86
        $region18: #{tpu_custom_call.1} parent=11 // pred_check_branch
          %221 = sbr.rel (%p219) target = $region20
        $region19: #{tpu_custom_call.1} parent=11 // pred_region
          _
        $region20: #{tpu_custom_call.1} parent=11 // pred_fallthru
          _
        // Predicated region
        $region21: #{tpu_custom_call.1} parent=11 // pred_check
          %p222 = pneg %p107
        $region22: #{tpu_custom_call.1} parent=11 // pred_check_branch
          %224 = sbr.rel (%p222) target = $region24
        $region23: #{tpu_custom_call.1} parent=11 // pred_region
          %s226 = ssub.s32 3072, 3072
          %227 = vsyncadd [#allocation3], %s226
          %s228 = sshll.u32 [#allocation2], 4
          %s229 = int_to_ptr.vmem [resolvable:$true] %s228
          %234 = dma.hbm_to_vmem [thread:$0]  %s3, 3072, %s229, [#allocation3], 128, 128, 8
        $region24: #{tpu_custom_call.1} parent=11 // pred_fallthru
          _
        // Predicated region
        $region25: #{tpu_custom_call.1} parent=11 // pred_check
          %p235 = pneg %p128
        $region26: #{tpu_custom_call.1} parent=11 // pred_check_branch
          %237 = sbr.rel (%p235) target = $region28
        $region27: #{tpu_custom_call.1} parent=11 // pred_region
          _
        $region28: #{tpu_custom_call.1} parent=11 // pred_fallthru
          _
        // Predicated region
        $region29: #{tpu_custom_call.1} parent=11 // pred_check
          %p238 = pneg %p149
        $region30: #{tpu_custom_call.1} parent=11 // pred_check_branch
          %240 = sbr.rel (%p238) target = $region32
        $region31: #{tpu_custom_call.1} parent=11 // pred_region
          _
        $region32: #{tpu_custom_call.1} parent=11 // pred_fallthru
          _
      $region12: #{tpu_custom_call.1} parent=5 // pred_fallthru
        _
      %p241 = scmp.lt.s32.totalorder %s18, 2
      // Predicated region
      $region33: #{tpu_custom_call.1} parent=5 // pred_check
        %p242 = pneg %p241
      $region34: #{tpu_custom_call.1} parent=5 // pred_check_branch
        %244 = sbr.rel (%p242) target = $region36
      $region35: #{tpu_custom_call.1} parent=5 // pred_region
        // Predicated region
        $region37: #{tpu_custom_call.1} parent=35 // pred_check
          %p245 = pneg %p38
        $region38: #{tpu_custom_call.1} parent=35 // pred_check_branch
          %247 = sbr.rel (%p245) target = $region40
        $region39: #{tpu_custom_call.1} parent=35 // pred_region
          %p248 = scmp.lt.s32.totalorder %s18, 1
          %s249 = scalar_select %p248, %s18, 1
          %s250 = smul.addr %s249, 6
          %s251 = smul.addr %s250, 4
          %s252 = scalar_lea.vmem %s0, %s251
        $region40: #{tpu_custom_call.1} parent=35 // pred_fallthru
          _
      $region36: #{tpu_custom_call.1} parent=5 // pred_fallthru
        _
      %p253 = scmp.le.s32.totalorder 1, %s18
      %p254 = scmp.lt.s32.totalorder %s18, 3
      %p255 = pnand %p253, %p254
      %p256 = pneg %p255
      // Predicated region
      $region41: #{tpu_custom_call.1} parent=5 // pred_check
        _
      $region42: #{tpu_custom_call.1} parent=5 // pred_check_branch
        %258 = sbr.rel (%p255) target = $region44
      $region43: #{tpu_custom_call.1} parent=5 // pred_region
        %s259 = ssub.s32 %s18, 1
        // Predicated region
        $region45: #{tpu_custom_call.1} parent=43 // pred_check
          %p260 = pneg %p107
        $region46: #{tpu_custom_call.1} parent=43 // pred_check_branch
          %262 = sbr.rel (%p260) target = $region48
        $region47: #{tpu_custom_call.1} parent=43 // pred_region
          %263 = dma.done [#allocation3], 3072
        $region48: #{tpu_custom_call.1} parent=43 // pred_fallthru
          _
        %p264 = scmp.lt.s32.totalorder %s23, 1
        %s265 = scalar_select %p264, %s23, 1
        %s266 = smul.addr %s265, 6
        %s267 = smul.addr %s266, 4
        %s268 = scalar_lea.vmem %s0, %s267
        %p269 = pneg %p44
        %p270 = pneg %p41
        %p271 = pneg %p65
        %p272 = pneg %p62
        %p273 = pneg %p86
        %p274 = pneg %p83
        %p275 = pneg %p107
        %p276 = pneg %p104
        %p277 = pneg %p128
        %p278 = pneg %p125
        %p279 = pneg %p149
        %p280 = pneg %p146
        %p281 = pneg %p175
        %p282 = pneg %p172
        %p283 = scmp.lt.s32.totalorder %s23, 1
        %s284 = scalar_select %p283, %s23, 1
        %s285 = smul.addr %s284, 6
        %s286 = smul.addr %s285, 8
        %s287 = scalar_lea.vmem %s6, %s286
        %p288 = pneg %p201
        %p289 = pneg %p198
        %s290 = sand.u32 %s188, 1
        %s291 = scalar_lea.sflag [#allocation4], %s290
        %s292 = sand.u32 %s188, 1
        %s293 = smul.addr %s292, 192
        %s294 = scalar_lea.vmem [#allocation5], %s293
        %p295 = scmp.lt.s32.totalorder %s23, 1
        %s296 = scalar_select %p295, %s23, 1
        %s297 = smul.addr %s296, 6
        %s298 = smul.addr %s297, 4
        %s299 = scalar_lea.vmem %s0, %s298
        %p300 = scmp.lt.s32.totalorder %s23, 1
        %s301 = scalar_select %p300, %s23, 1
        %s302 = smul.addr %s301, 6
        %s303 = smul.addr %s302, 8
        %s304 = scalar_lea.vmem %s6, %s303
        %v306 = vld [vmem:[%s299] sm:$0xf]
        %v307 = vld [vmem:[%s299 + $0x4] sm:$0xf]
        %v308 = vld [vmem:[%s299 + $0x8] sm:$0xf]
        %v309 = vld [vmem:[%s299 + $0xc] sm:$0xf]
        %v310 = vld [vmem:[%s299 + $0x10] sm:$0xf]
        %v311 = vld [vmem:[%s299 + $0x14] sm:$0xf]
        %v312 = vld [vmem:[%s1] sm:$0xf]
        %v313 = vld [vmem:[%s1 + $0x4] sm:$0xf]
        %v314 = vld [vmem:[%s1 + $0x8] sm:$0xf]
        %v315 = vld [vmem:[%s1 + $0xc] sm:$0xf]
        %v316 = vld [vmem:[%s2] sm:$0x1]
        %v318 = vlaneseq
        %v319 = vshrl.u32 %v318, 7
        %v320 = vsub.s32 0, %v319
        %v321 = vrot.slane %v316, %v320
        %v329 = vunpack.c.l.b16 %v306
        %v330 = vunpack.c.l.b16 %v307
        %v331 = vunpack.c.l.b16 %v308
        %v332 = vunpack.c.l.b16 %v309
        %v333 = vunpack.c.l.b16 %v310
        %v334 = vunpack.c.l.b16 %v311
        %v335 = vpack.c.b16 %v330, %v329
        %v336 = vpack.c.b16 %v332, %v331
        %v337 = vpack.c.b16 %v334, %v333
        %v342 = vunpack.c.l.b16 %v312
        %v343 = vunpack.c.l.b16 %v313
        %v344 = vunpack.c.l.b16 %v314
        %v345 = vunpack.c.l.b16 %v315
        %v346 = vpack.c.b16 %v343, %v342
        %v347 = vpack.c.b16 %v345, %v344
        %vm350 = vcmask 261120
        %v352 = vsel %vm350, %v335, 0
        %v355 = vsel %vm350, %v336, 0
        %v358 = vsel %vm350, %v337, 0
        %360 = vmatprep.subr.bf16.mxu0 0
        %361 = vmatpush1.bf16.msra.mxu0 0
        %362 = vmatprep.subr.bf16.mxu0 0
        %363 = vmatpush1.bf16.msra.mxu0 0
        %364 = vmatprep.subr.bf16.mxu0 0
        %365 = vmatpush1.bf16.msra.mxu0 0
        %366 = vmatprep.subr.bf16.mxu0 0
        %367 = vmatpush1.bf16.msra.mxu0 0
        %368 = vmatprep.subr.bf16.mxu0 0
        %369 = vmatpush1.bf16.msra.mxu0 0
        %370 = vmatprep.subr.bf16.mxu0 0
        %371 = vmatpush1.bf16.msra.mxu0 0
        %372 = vmatprep.subr.bf16.mxu0 0
        %373 = vmatpush1.bf16.msra.mxu0 %v347
        %374 = vmatprep.subr.bf16.mxu0 0
        %375 = vmatpush1.bf16.msra.mxu0 %v346
        %376 = vmatprep.subr.bf16.mxu0 0
        %377 = vmatpush2.bf16.msra.mxu0 0
        %378 = vmatprep.subr.bf16.mxu0 0
        %379 = vmatpush2.bf16.msra.mxu0 0
        %380 = vmatprep.subr.bf16.mxu0 0
        %381 = vmatpush2.bf16.msra.mxu0 0
        %382 = vmatprep.subr.bf16.mxu0 0
        %383 = vmatpush2.bf16.msra.mxu0 0
        %384 = vmatprep.subr.bf16.mxu0 0
        %385 = vmatpush2.bf16.msra.mxu0 0
        %386 = vmatprep.subr.bf16.mxu0 0
        %387 = vmatpush2.bf16.msra.mxu0 0
        %388 = vmatprep.subr.bf16.mxu0 0
        %389 = vmatpush2.bf16.msra.mxu0 0
        %390 = vmatprep.subr.bf16.mxu0 0
        %391 = vmatpush2.bf16.msra.mxu0 0
        %392 = vmatprep.mubr.bf16.mxu0 0
        %393 = vmatmul.mubr.bf16.gmra.mxu0 %v352
        %v394 = vpop.f32.mrf.mxu0
        %v395 = vadd.f32 %v321, %v394
        %v396 = vpop.f32.mrf.mxu0
        %v397 = vpop.f32.mrf.mxu0
        %v398 = vadd.f32 %v321, %v397
        %v399 = vpop.f32.mrf.mxu0
        %400 = vmatprep.mubr.bf16.mxu0 0
        %401 = vmatmul.mubr.bf16.gmra.mxu0 %v355
        %v402 = vpop.f32.mrf.mxu0
        %v403 = vadd.f32 %v321, %v402
        %v404 = vpop.f32.mrf.mxu0
        %v405 = vpop.f32.mrf.mxu0
        %v406 = vadd.f32 %v321, %v405
        %v407 = vpop.f32.mrf.mxu0
        %408 = vmatprep.mubr.bf16.mxu0 0
        %409 = vmatmul.mubr.bf16.gmra.mxu0 %v358
        %v410 = vpop.f32.mrf.mxu0
        %v411 = vadd.f32 %v321, %v410
        %v412 = vpop.f32.mrf.mxu0
        %v413 = vpop.f32.mrf.mxu0
        %v414 = vadd.f32 %v321, %v413
        %v415 = vpop.f32.mrf.mxu0
        %416 = vdwg.mxu0
        %423 = vrot.lane.b32.xlu0 %v395, 120
        %v424 = vpop.permute.xlu0 %423
        %425 = vrot.lane.b32.xlu0 %v398, 120
        %v426 = vpop.permute.xlu0 %425
        %427 = vrot.lane.b32.xlu0 %v403, 120
        %v428 = vpop.permute.xlu0 %427
        %429 = vrot.lane.b32.xlu0 %v406, 120
        %v430 = vpop.permute.xlu0 %429
        %431 = vrot.lane.b32.xlu0 %v411, 120
        %v432 = vpop.permute.xlu0 %431
        %433 = vrot.lane.b32.xlu0 %v414, 120
        %v434 = vpop.permute.xlu0 %433
        %435 = vrot.lane.b32.xlu0 %v395, 112
        %v436 = vpop.permute.xlu0 %435
        %437 = vrot.lane.b32.xlu0 %v398, 112
        %v438 = vpop.permute.xlu0 %437
        %439 = vrot.lane.b32.xlu0 %v403, 112
        %v440 = vpop.permute.xlu0 %439
        %441 = vrot.lane.b32.xlu0 %v406, 112
        %v442 = vpop.permute.xlu0 %441
        %443 = vrot.lane.b32.xlu0 %v411, 112
        %v444 = vpop.permute.xlu0 %443
        %445 = vrot.lane.b32.xlu0 %v414, 112
        %v446 = vpop.permute.xlu0 %445
        %447 = vrot.lane.b32.xlu0 %v395, 104
        %v448 = vpop.permute.xlu0 %447
        %449 = vrot.lane.b32.xlu0 %v398, 104
        %v450 = vpop.permute.xlu0 %449
        %451 = vrot.lane.b32.xlu0 %v403, 104
        %v452 = vpop.permute.xlu0 %451
        %453 = vrot.lane.b32.xlu0 %v406, 104
        %v454 = vpop.permute.xlu0 %453
        %455 = vrot.lane.b32.xlu0 %v411, 104
        %v456 = vpop.permute.xlu0 %455
        %457 = vrot.lane.b32.xlu0 %v414, 104
        %v458 = vpop.permute.xlu0 %457
        %477 = vrot.lane.b32.xlu0 %v395, 96
        %v478 = vpop.permute.xlu0 %477
        %479 = vrot.lane.b32.xlu0 %v398, 96
        %v480 = vpop.permute.xlu0 %479
        %481 = vrot.lane.b32.xlu0 %v403, 96
        %v482 = vpop.permute.xlu0 %481
        %vm483 = vcmask 64512
        %v484 = vsel %vm483, %v395, 0
        %v486 = vsel %vm483, %v398, 0
        %v488 = vsel %vm483, %v403, 0
        %v490 = vsel %vm483, %v478, 0
        %v492 = vsel %vm483, %v480, 0
        %v494 = vsel %vm483, %v482, 0
        %496 = vmatprep.subr.mxu0 0.0
        %497 = vmatpush1.xpose.msra.mxu0 0.0
        %498 = vmatprep.subr.mxu0 0.0
        %499 = vmatpush1.xpose.msra.mxu0 0.0
        %500 = vmatprep.subr.mxu0 0.0
        %501 = vmatpush1.xpose.msra.mxu0 0.0
        %502 = vmatprep.subr.mxu0 0.0
        %503 = vmatpush1.xpose.msra.mxu0 0.0
        %504 = vmatprep.subr.mxu0 0.0
        %505 = vmatpush1.xpose.msra.mxu0 0.0
        %506 = vmatprep.subr.mxu0 0.0
        %507 = vmatpush1.xpose.msra.mxu0 0.0
        %508 = vmatprep.subr.mxu0 0.0
        %509 = vmatpush1.xpose.msra.mxu0 0.0
        %510 = vmatprep.subr.mxu0 0.0
        %511 = vmatpush1.xpose.msra.mxu0 0.0
        %512 = vmatprep.subr.mxu0 0.0
        %513 = vmatpush1.xpose.msra.mxu0 0.0
        %514 = vmatprep.subr.mxu0 0.0
        %515 = vmatpush1.xpose.msra.mxu0 0.0
        %516 = vmatprep.subr.mxu0 0.0
        %517 = vmatpush1.xpose.msra.mxu0 0.0
        %518 = vmatprep.subr.mxu0 0.0
        %519 = vmatpush1.xpose.msra.mxu0 0.0
        %520 = vmatprep.subr.mxu0 0.0
        %521 = vmatpush1.xpose.msra.mxu0 0.0
        %522 = vmatprep.subr.mxu0 0.0
        %523 = vmatpush1.xpose.msra.mxu0 %v494
        %524 = vmatprep.subr.mxu0 0.0
        %525 = vmatpush1.xpose.msra.mxu0 %v492
        %526 = vmatprep.subr.mxu0 0.0
        %527 = vmatpush1.xpose.msra.mxu0 %v490
        %528 = vmatprep.subr.mxu0 0.0
        %529 = vmatpush2.xpose.msra.mxu0 0.0
        %530 = vmatprep.subr.mxu0 0.0
        %531 = vmatpush2.xpose.msra.mxu0 0.0
        %532 = vmatprep.subr.mxu0 0.0
        %533 = vmatpush2.xpose.msra.mxu0 0.0
        %534 = vmatprep.subr.mxu0 0.0
        %535 = vmatpush2.xpose.msra.mxu0 0.0
        %536 = vmatprep.subr.mxu0 0.0
        %537 = vmatpush2.xpose.msra.mxu0 0.0
        %538 = vmatprep.subr.mxu0 0.0
        %539 = vmatpush2.xpose.msra.mxu0 0.0
        %540 = vmatprep.subr.mxu0 0.0
        %541 = vmatpush2.xpose.msra.mxu0 0.0
        %542 = vmatprep.subr.mxu0 0.0
        %543 = vmatpush2.xpose.msra.mxu0 0.0
        %544 = vmatprep.subr.mxu0 0.0
        %545 = vmatpush2.xpose.msra.mxu0 0.0
        %546 = vmatprep.subr.mxu0 0.0
        %547 = vmatpush2.xpose.msra.mxu0 0.0
        %548 = vmatprep.subr.mxu0 0.0
        %549 = vmatpush2.xpose.msra.mxu0 0.0
        %550 = vmatprep.subr.mxu0 0.0
        %551 = vmatpush2.xpose.msra.mxu0 0.0
        %552 = vmatprep.subr.mxu0 0.0
        %553 = vmatpush2.xpose.msra.mxu0 0.0
        %554 = vmatprep.subr.mxu0 0.0
        %555 = vmatpush2.xpose.msra.mxu0 0.0
        %556 = vmatprep.subr.mxu0 0.0
        %557 = vmatpush2.xpose.msra.mxu0 0.0
        %558 = vmatprep.subr.mxu0 0.0
        %559 = vmatpush2.xpose.msra.mxu0 0.0
        %560 = vmatprep.mubr.f32.mxu0 0.0
        %561 = vmatmul.mubr.f32.gmra.mxu0 %v484
        %v562 = vpop.f32.mrf.mxu0
        %v563 = vadd.f32 0.0, %v562
        %v564 = vpop.f32.mrf.mxu0
        %565 = vmatprep.mubr.f32.mxu0 0.0
        %566 = vmatmul.mubr.f32.gmra.mxu0 %v486
        %v567 = vpop.f32.mrf.mxu0
        %v568 = vadd.f32 0.0, %v567
        %v569 = vpop.f32.mrf.mxu0
        %570 = vmatprep.mubr.f32.mxu0 0.0
        %571 = vmatmul.mubr.f32.gmra.mxu0 %v488
        %v572 = vpop.f32.mrf.mxu0
        %v573 = vadd.f32 0.0, %v572
        %v574 = vpop.f32.mrf.mxu0
        %575 = vdwg.mxu0
        %576 = vrot.lane.b32.xlu0 %v424, 96
        %v577 = vpop.permute.xlu0 %576
        %578 = vrot.lane.b32.xlu0 %v426, 96
        %v579 = vpop.permute.xlu0 %578
        %580 = vrot.lane.b32.xlu0 %v428, 96
        %v581 = vpop.permute.xlu0 %580
        %v582 = vsel %vm483, %v424, 0
        %v584 = vsel %vm483, %v426, 0
        %v586 = vsel %vm483, %v428, 0
        %v588 = vsel %vm483, %v577, 0
        %v590 = vsel %vm483, %v579, 0
        %v592 = vsel %vm483, %v581, 0
        %594 = vmatprep.subr.mxu0 0.0
        %595 = vmatpush1.xpose.msra.mxu0 0.0
        %596 = vmatprep.subr.mxu0 0.0
        %597 = vmatpush1.xpose.msra.mxu0 0.0
        %598 = vmatprep.subr.mxu0 0.0
        %599 = vmatpush1.xpose.msra.mxu0 0.0
        %600 = vmatprep.subr.mxu0 0.0
        %601 = vmatpush1.xpose.msra.mxu0 0.0
        %602 = vmatprep.subr.mxu0 0.0
        %603 = vmatpush1.xpose.msra.mxu0 0.0
        %604 = vmatprep.subr.mxu0 0.0
        %605 = vmatpush1.xpose.msra.mxu0 0.0
        %606 = vmatprep.subr.mxu0 0.0
        %607 = vmatpush1.xpose.msra.mxu0 0.0
        %608 = vmatprep.subr.mxu0 0.0
        %609 = vmatpush1.xpose.msra.mxu0 0.0
        %610 = vmatprep.subr.mxu0 0.0
        %611 = vmatpush1.xpose.msra.mxu0 0.0
        %612 = vmatprep.subr.mxu0 0.0
        %613 = vmatpush1.xpose.msra.mxu0 0.0
        %614 = vmatprep.subr.mxu0 0.0
        %615 = vmatpush1.xpose.msra.mxu0 0.0
        %616 = vmatprep.subr.mxu0 0.0
        %617 = vmatpush1.xpose.msra.mxu0 0.0
        %618 = vmatprep.subr.mxu0 0.0
        %619 = vmatpush1.xpose.msra.mxu0 0.0
        %620 = vmatprep.subr.mxu0 0.0
        %621 = vmatpush1.xpose.msra.mxu0 %v592
        %622 = vmatprep.subr.mxu0 0.0
        %623 = vmatpush1.xpose.msra.mxu0 %v590
        %624 = vmatprep.subr.mxu0 0.0
        %625 = vmatpush1.xpose.msra.mxu0 %v588
        %626 = vmatprep.subr.mxu0 0.0
        %627 = vmatpush2.xpose.msra.mxu0 0.0
        %628 = vmatprep.subr.mxu0 0.0
        %629 = vmatpush2.xpose.msra.mxu0 0.0
        %630 = vmatprep.subr.mxu0 0.0
        %631 = vmatpush2.xpose.msra.mxu0 0.0
        %632 = vmatprep.subr.mxu0 0.0
        %633 = vmatpush2.xpose.msra.mxu0 0.0
        %634 = vmatprep.subr.mxu0 0.0
        %635 = vmatpush2.xpose.msra.mxu0 0.0
        %636 = vmatprep.subr.mxu0 0.0
        %637 = vmatpush2.xpose.msra.mxu0 0.0
        %638 = vmatprep.subr.mxu0 0.0
        %639 = vmatpush2.xpose.msra.mxu0 0.0
        %640 = vmatprep.subr.mxu0 0.0
        %641 = vmatpush2.xpose.msra.mxu0 0.0
        %642 = vmatprep.subr.mxu0 0.0
        %643 = vmatpush2.xpose.msra.mxu0 0.0
        %644 = vmatprep.subr.mxu0 0.0
        %645 = vmatpush2.xpose.msra.mxu0 0.0
        %646 = vmatprep.subr.mxu0 0.0
        %647 = vmatpush2.xpose.msra.mxu0 0.0
        %648 = vmatprep.subr.mxu0 0.0
        %649 = vmatpush2.xpose.msra.mxu0 0.0
        %650 = vmatprep.subr.mxu0 0.0
        %651 = vmatpush2.xpose.msra.mxu0 0.0
        %652 = vmatprep.subr.mxu0 0.0
        %653 = vmatpush2.xpose.msra.mxu0 0.0
        %654 = vmatprep.subr.mxu0 0.0
        %655 = vmatpush2.xpose.msra.mxu0 0.0
        %656 = vmatprep.subr.mxu0 0.0
        %657 = vmatpush2.xpose.msra.mxu0 0.0
        %658 = vmatprep.mubr.f32.mxu0 0.0
        %659 = vmatmul.mubr.f32.gmra.mxu0 %v582
        %v660 = vpop.f32.mrf.mxu0
        %v661 = vadd.f32 0.0, %v660
        %v662 = vpop.f32.mrf.mxu0
        %663 = vmatprep.mubr.f32.mxu0 0.0
        %664 = vmatmul.mubr.f32.gmra.mxu0 %v584
        %v665 = vpop.f32.mrf.mxu0
        %v666 = vadd.f32 0.0, %v665
        %v667 = vpop.f32.mrf.mxu0
        %668 = vmatprep.mubr.f32.mxu0 0.0
        %669 = vmatmul.mubr.f32.gmra.mxu0 %v586
        %v670 = vpop.f32.mrf.mxu0
        %v671 = vadd.f32 0.0, %v670
        %v672 = vpop.f32.mrf.mxu0
        %673 = vdwg.mxu0
        %674 = vrot.lane.b32.xlu0 %v436, 96
        %v675 = vpop.permute.xlu0 %674
        %676 = vrot.lane.b32.xlu0 %v438, 96
        %v677 = vpop.permute.xlu0 %676
        %678 = vrot.lane.b32.xlu0 %v440, 96
        %v679 = vpop.permute.xlu0 %678
        %v680 = vsel %vm483, %v436, 0
        %v682 = vsel %vm483, %v438, 0
        %v684 = vsel %vm483, %v440, 0
        %v686 = vsel %vm483, %v675, 0
        %v688 = vsel %vm483, %v677, 0
        %v690 = vsel %vm483, %v679, 0
        %692 = vmatprep.subr.mxu0 0.0
        %693 = vmatpush1.xpose.msra.mxu0 0.0
        %694 = vmatprep.subr.mxu0 0.0
        %695 = vmatpush1.xpose.msra.mxu0 0.0
        %696 = vmatprep.subr.mxu0 0.0
        %697 = vmatpush1.xpose.msra.mxu0 0.0
        %698 = vmatprep.subr.mxu0 0.0
        %699 = vmatpush1.xpose.msra.mxu0 0.0
        %700 = vmatprep.subr.mxu0 0.0
        %701 = vmatpush1.xpose.msra.mxu0 0.0
        %702 = vmatprep.subr.mxu0 0.0
        %703 = vmatpush1.xpose.msra.mxu0 0.0
        %704 = vmatprep.subr.mxu0 0.0
        %705 = vmatpush1.xpose.msra.mxu0 0.0
        %706 = vmatprep.subr.mxu0 0.0
        %707 = vmatpush1.xpose.msra.mxu0 0.0
        %708 = vmatprep.subr.mxu0 0.0
        %709 = vmatpush1.xpose.msra.mxu0 0.0
        %710 = vmatprep.subr.mxu0 0.0
        %711 = vmatpush1.xpose.msra.mxu0 0.0
        %712 = vmatprep.subr.mxu0 0.0
        %713 = vmatpush1.xpose.msra.mxu0 0.0
        %714 = vmatprep.subr.mxu0 0.0
        %715 = vmatpush1.xpose.msra.mxu0 0.0
        %716 = vmatprep.subr.mxu0 0.0
        %717 = vmatpush1.xpose.msra.mxu0 0.0
        %718 = vmatprep.subr.mxu0 0.0
        %719 = vmatpush1.xpose.msra.mxu0 %v690
        %720 = vmatprep.subr.mxu0 0.0
        %721 = vmatpush1.xpose.msra.mxu0 %v688
        %722 = vmatprep.subr.mxu0 0.0
        %723 = vmatpush1.xpose.msra.mxu0 %v686
        %724 = vmatprep.subr.mxu0 0.0
        %725 = vmatpush2.xpose.msra.mxu0 0.0
        %726 = vmatprep.subr.mxu0 0.0
        %727 = vmatpush2.xpose.msra.mxu0 0.0
        %728 = vmatprep.subr.mxu0 0.0
        %729 = vmatpush2.xpose.msra.mxu0 0.0
        %730 = vmatprep.subr.mxu0 0.0
        %731 = vmatpush2.xpose.msra.mxu0 0.0
        %732 = vmatprep.subr.mxu0 0.0
        %733 = vmatpush2.xpose.msra.mxu0 0.0
        %734 = vmatprep.subr.mxu0 0.0
        %735 = vmatpush2.xpose.msra.mxu0 0.0
        %736 = vmatprep.subr.mxu0 0.0
        %737 = vmatpush2.xpose.msra.mxu0 0.0
        %738 = vmatprep.subr.mxu0 0.0
        %739 = vmatpush2.xpose.msra.mxu0 0.0
        %740 = vmatprep.subr.mxu0 0.0
        %741 = vmatpush2.xpose.msra.mxu0 0.0
        %742 = vmatprep.subr.mxu0 0.0
        %743 = vmatpush2.xpose.msra.mxu0 0.0
        %744 = vmatprep.subr.mxu0 0.0
        %745 = vmatpush2.xpose.msra.mxu0 0.0
        %746 = vmatprep.subr.mxu0 0.0
        %747 = vmatpush2.xpose.msra.mxu0 0.0
        %748 = vmatprep.subr.mxu0 0.0
        %749 = vmatpush2.xpose.msra.mxu0 0.0
        %750 = vmatprep.subr.mxu0 0.0
        %751 = vmatpush2.xpose.msra.mxu0 0.0
        %752 = vmatprep.subr.mxu0 0.0
        %753 = vmatpush2.xpose.msra.mxu0 0.0
        %754 = vmatprep.subr.mxu0 0.0
        %755 = vmatpush2.xpose.msra.mxu0 0.0
        %756 = vmatprep.mubr.f32.mxu0 0.0
        %757 = vmatmul.mubr.f32.gmra.mxu0 %v680
        %v758 = vpop.f32.mrf.mxu0
        %v759 = vadd.f32 0.0, %v758
        %v760 = vpop.f32.mrf.mxu0
        %761 = vmatprep.mubr.f32.mxu0 0.0
        %762 = vmatmul.mubr.f32.gmra.mxu0 %v682
        %v763 = vpop.f32.mrf.mxu0
        %v764 = vadd.f32 0.0, %v763
        %v765 = vpop.f32.mrf.mxu0
        %766 = vmatprep.mubr.f32.mxu0 0.0
        %767 = vmatmul.mubr.f32.gmra.mxu0 %v684
        %v768 = vpop.f32.mrf.mxu0
        %v769 = vadd.f32 0.0, %v768
        %v770 = vpop.f32.mrf.mxu0
        %771 = vdwg.mxu0
        %772 = vrot.lane.b32.xlu0 %v448, 96
        %v773 = vpop.permute.xlu0 %772
        %774 = vrot.lane.b32.xlu0 %v450, 96
        %v775 = vpop.permute.xlu0 %774
        %776 = vrot.lane.b32.xlu0 %v452, 96
        %v777 = vpop.permute.xlu0 %776
        %v778 = vsel %vm483, %v448, 0
        %v780 = vsel %vm483, %v450, 0
        %v782 = vsel %vm483, %v452, 0
        %v784 = vsel %vm483, %v773, 0
        %v786 = vsel %vm483, %v775, 0
        %v788 = vsel %vm483, %v777, 0
        %790 = vmatprep.subr.mxu0 0.0
        %791 = vmatpush1.xpose.msra.mxu0 0.0
        %792 = vmatprep.subr.mxu0 0.0
        %793 = vmatpush1.xpose.msra.mxu0 0.0
        %794 = vmatprep.subr.mxu0 0.0
        %795 = vmatpush1.xpose.msra.mxu0 0.0
        %796 = vmatprep.subr.mxu0 0.0
        %797 = vmatpush1.xpose.msra.mxu0 0.0
        %798 = vmatprep.subr.mxu0 0.0
        %799 = vmatpush1.xpose.msra.mxu0 0.0
        %800 = vmatprep.subr.mxu0 0.0
        %801 = vmatpush1.xpose.msra.mxu0 0.0
        %802 = vmatprep.subr.mxu0 0.0
        %803 = vmatpush1.xpose.msra.mxu0 0.0
        %804 = vmatprep.subr.mxu0 0.0
        %805 = vmatpush1.xpose.msra.mxu0 0.0
        %806 = vmatprep.subr.mxu0 0.0
        %807 = vmatpush1.xpose.msra.mxu0 0.0
        %808 = vmatprep.subr.mxu0 0.0
        %809 = vmatpush1.xpose.msra.mxu0 0.0
        %810 = vmatprep.subr.mxu0 0.0
        %811 = vmatpush1.xpose.msra.mxu0 0.0
        %812 = vmatprep.subr.mxu0 0.0
        %813 = vmatpush1.xpose.msra.mxu0 0.0
        %814 = vmatprep.subr.mxu0 0.0
        %815 = vmatpush1.xpose.msra.mxu0 0.0
        %816 = vmatprep.subr.mxu0 0.0
        %817 = vmatpush1.xpose.msra.mxu0 %v788
        %818 = vmatprep.subr.mxu0 0.0
        %819 = vmatpush1.xpose.msra.mxu0 %v786
        %820 = vmatprep.subr.mxu0 0.0
        %821 = vmatpush1.xpose.msra.mxu0 %v784
        %822 = vmatprep.subr.mxu0 0.0
        %823 = vmatpush2.xpose.msra.mxu0 0.0
        %824 = vmatprep.subr.mxu0 0.0
        %825 = vmatpush2.xpose.msra.mxu0 0.0
        %826 = vmatprep.subr.mxu0 0.0
        %827 = vmatpush2.xpose.msra.mxu0 0.0
        %828 = vmatprep.subr.mxu0 0.0
        %829 = vmatpush2.xpose.msra.mxu0 0.0
        %830 = vmatprep.subr.mxu0 0.0
        %831 = vmatpush2.xpose.msra.mxu0 0.0
        %832 = vmatprep.subr.mxu0 0.0
        %833 = vmatpush2.xpose.msra.mxu0 0.0
        %834 = vmatprep.subr.mxu0 0.0
        %835 = vmatpush2.xpose.msra.mxu0 0.0
        %836 = vmatprep.subr.mxu0 0.0
        %837 = vmatpush2.xpose.msra.mxu0 0.0
        %838 = vmatprep.subr.mxu0 0.0
        %839 = vmatpush2.xpose.msra.mxu0 0.0
        %840 = vmatprep.subr.mxu0 0.0
        %841 = vmatpush2.xpose.msra.mxu0 0.0
        %842 = vmatprep.subr.mxu0 0.0
        %843 = vmatpush2.xpose.msra.mxu0 0.0
        %844 = vmatprep.subr.mxu0 0.0
        %845 = vmatpush2.xpose.msra.mxu0 0.0
        %846 = vmatprep.subr.mxu0 0.0
        %847 = vmatpush2.xpose.msra.mxu0 0.0
        %848 = vmatprep.subr.mxu0 0.0
        %849 = vmatpush2.xpose.msra.mxu0 0.0
        %850 = vmatprep.subr.mxu0 0.0
        %851 = vmatpush2.xpose.msra.mxu0 0.0
        %852 = vmatprep.subr.mxu0 0.0
        %853 = vmatpush2.xpose.msra.mxu0 0.0
        %854 = vmatprep.mubr.f32.mxu0 0.0
        %855 = vmatmul.mubr.f32.gmra.mxu0 %v778
        %v856 = vpop.f32.mrf.mxu0
        %v857 = vadd.f32 0.0, %v856
        %v858 = vpop.f32.mrf.mxu0
        %859 = vmatprep.mubr.f32.mxu0 0.0
        %860 = vmatmul.mubr.f32.gmra.mxu0 %v780
        %v861 = vpop.f32.mrf.mxu0
        %v862 = vadd.f32 0.0, %v861
        %v863 = vpop.f32.mrf.mxu0
        %864 = vmatprep.mubr.f32.mxu0 0.0
        %865 = vmatmul.mubr.f32.gmra.mxu0 %v782
        %v866 = vpop.f32.mrf.mxu0
        %v867 = vadd.f32 0.0, %v866
        %v868 = vpop.f32.mrf.mxu0
        %869 = vdwg.mxu0
        %870 = vrot.lane.b32.xlu0 %v406, 96
        %v871 = vpop.permute.xlu0 %870
        %872 = vrot.lane.b32.xlu0 %v411, 96
        %v873 = vpop.permute.xlu0 %872
        %874 = vrot.lane.b32.xlu0 %v414, 96
        %v875 = vpop.permute.xlu0 %874
        %v876 = vsel %vm483, %v406, 0
        %v878 = vsel %vm483, %v411, 0
        %v880 = vsel %vm483, %v414, 0
        %v882 = vsel %vm483, %v871, 0
        %v884 = vsel %vm483, %v873, 0
        %v886 = vsel %vm483, %v875, 0
        %888 = vmatprep.subr.mxu0 0.0
        %889 = vmatpush1.xpose.msra.mxu0 0.0
        %890 = vmatprep.subr.mxu0 0.0
        %891 = vmatpush1.xpose.msra.mxu0 0.0
        %892 = vmatprep.subr.mxu0 0.0
        %893 = vmatpush1.xpose.msra.mxu0 0.0
        %894 = vmatprep.subr.mxu0 0.0
        %895 = vmatpush1.xpose.msra.mxu0 0.0
        %896 = vmatprep.subr.mxu0 0.0
        %897 = vmatpush1.xpose.msra.mxu0 0.0
        %898 = vmatprep.subr.mxu0 0.0
        %899 = vmatpush1.xpose.msra.mxu0 0.0
        %900 = vmatprep.subr.mxu0 0.0
        %901 = vmatpush1.xpose.msra.mxu0 0.0
        %902 = vmatprep.subr.mxu0 0.0
        %903 = vmatpush1.xpose.msra.mxu0 0.0
        %904 = vmatprep.subr.mxu0 0.0
        %905 = vmatpush1.xpose.msra.mxu0 0.0
        %906 = vmatprep.subr.mxu0 0.0
        %907 = vmatpush1.xpose.msra.mxu0 0.0
        %908 = vmatprep.subr.mxu0 0.0
        %909 = vmatpush1.xpose.msra.mxu0 0.0
        %910 = vmatprep.subr.mxu0 0.0
        %911 = vmatpush1.xpose.msra.mxu0 0.0
        %912 = vmatprep.subr.mxu0 0.0
        %913 = vmatpush1.xpose.msra.mxu0 0.0
        %914 = vmatprep.subr.mxu0 0.0
        %915 = vmatpush1.xpose.msra.mxu0 %v886
        %916 = vmatprep.subr.mxu0 0.0
        %917 = vmatpush1.xpose.msra.mxu0 %v884
        %918 = vmatprep.subr.mxu0 0.0
        %919 = vmatpush1.xpose.msra.mxu0 %v882
        %920 = vmatprep.subr.mxu0 0.0
        %921 = vmatpush2.xpose.msra.mxu0 0.0
        %922 = vmatprep.subr.mxu0 0.0
        %923 = vmatpush2.xpose.msra.mxu0 0.0
        %924 = vmatprep.subr.mxu0 0.0
        %925 = vmatpush2.xpose.msra.mxu0 0.0
        %926 = vmatprep.subr.mxu0 0.0
        %927 = vmatpush2.xpose.msra.mxu0 0.0
        %928 = vmatprep.subr.mxu0 0.0
        %929 = vmatpush2.xpose.msra.mxu0 0.0
        %930 = vmatprep.subr.mxu0 0.0
        %931 = vmatpush2.xpose.msra.mxu0 0.0
        %932 = vmatprep.subr.mxu0 0.0
        %933 = vmatpush2.xpose.msra.mxu0 0.0
        %934 = vmatprep.subr.mxu0 0.0
        %935 = vmatpush2.xpose.msra.mxu0 0.0
        %936 = vmatprep.subr.mxu0 0.0
        %937 = vmatpush2.xpose.msra.mxu0 0.0
        %938 = vmatprep.subr.mxu0 0.0
        %939 = vmatpush2.xpose.msra.mxu0 0.0
        %940 = vmatprep.subr.mxu0 0.0
        %941 = vmatpush2.xpose.msra.mxu0 0.0
        %942 = vmatprep.subr.mxu0 0.0
        %943 = vmatpush2.xpose.msra.mxu0 0.0
        %944 = vmatprep.subr.mxu0 0.0
        %945 = vmatpush2.xpose.msra.mxu0 0.0
        %946 = vmatprep.subr.mxu0 0.0
        %947 = vmatpush2.xpose.msra.mxu0 0.0
        %948 = vmatprep.subr.mxu0 0.0
        %949 = vmatpush2.xpose.msra.mxu0 0.0
        %950 = vmatprep.subr.mxu0 0.0
        %951 = vmatpush2.xpose.msra.mxu0 0.0
        %952 = vmatprep.mubr.f32.mxu0 0.0
        %953 = vmatmul.mubr.f32.gmra.mxu0 %v876
        %v954 = vpop.f32.mrf.mxu0
        %v955 = vadd.f32 0.0, %v954
        %v956 = vpop.f32.mrf.mxu0
        %957 = vmatprep.mubr.f32.mxu0 0.0
        %958 = vmatmul.mubr.f32.gmra.mxu0 %v878
        %v959 = vpop.f32.mrf.mxu0
        %v960 = vadd.f32 0.0, %v959
        %v961 = vpop.f32.mrf.mxu0
        %962 = vmatprep.mubr.f32.mxu0 0.0
        %963 = vmatmul.mubr.f32.gmra.mxu0 %v880
        %v964 = vpop.f32.mrf.mxu0
        %v965 = vadd.f32 0.0, %v964
        %v966 = vpop.f32.mrf.mxu0
        %967 = vdwg.mxu0
        %968 = vrot.lane.b32.xlu0 %v430, 96
        %v969 = vpop.permute.xlu0 %968
        %970 = vrot.lane.b32.xlu0 %v432, 96
        %v971 = vpop.permute.xlu0 %970
        %972 = vrot.lane.b32.xlu0 %v434, 96
        %v973 = vpop.permute.xlu0 %972
        %v974 = vsel %vm483, %v430, 0
        %v976 = vsel %vm483, %v432, 0
        %v978 = vsel %vm483, %v434, 0
        %v980 = vsel %vm483, %v969, 0
        %v982 = vsel %vm483, %v971, 0
        %v984 = vsel %vm483, %v973, 0
        %986 = vmatprep.subr.mxu0 0.0
        %987 = vmatpush1.xpose.msra.mxu0 0.0
        %988 = vmatprep.subr.mxu0 0.0
        %989 = vmatpush1.xpose.msra.mxu0 0.0
        %990 = vmatprep.subr.mxu0 0.0
        %991 = vmatpush1.xpose.msra.mxu0 0.0
        %992 = vmatprep.subr.mxu0 0.0
        %993 = vmatpush1.xpose.msra.mxu0 0.0
        %994 = vmatprep.subr.mxu0 0.0
        %995 = vmatpush1.xpose.msra.mxu0 0.0
        %996 = vmatprep.subr.mxu0 0.0
        %997 = vmatpush1.xpose.msra.mxu0 0.0
        %998 = vmatprep.subr.mxu0 0.0
        %999 = vmatpush1.xpose.msra.mxu0 0.0
        %1000 = vmatprep.subr.mxu0 0.0
        %1001 = vmatpush1.xpose.msra.mxu0 0.0
        %1002 = vmatprep.subr.mxu0 0.0
        %1003 = vmatpush1.xpose.msra.mxu0 0.0
        %1004 = vmatprep.subr.mxu0 0.0
        %1005 = vmatpush1.xpose.msra.mxu0 0.0
        %1006 = vmatprep.subr.mxu0 0.0
        %1007 = vmatpush1.xpose.msra.mxu0 0.0
        %1008 = vmatprep.subr.mxu0 0.0
        %1009 = vmatpush1.xpose.msra.mxu0 0.0
        %1010 = vmatprep.subr.mxu0 0.0
        %1011 = vmatpush1.xpose.msra.mxu0 0.0
        %1012 = vmatprep.subr.mxu0 0.0
        %1013 = vmatpush1.xpose.msra.mxu0 %v984
        %1014 = vmatprep.subr.mxu0 0.0
        %1015 = vmatpush1.xpose.msra.mxu0 %v982
        %1016 = vmatprep.subr.mxu0 0.0
        %1017 = vmatpush1.xpose.msra.mxu0 %v980
        %1018 = vmatprep.subr.mxu0 0.0
        %1019 = vmatpush2.xpose.msra.mxu0 0.0
        %1020 = vmatprep.subr.mxu0 0.0
        %1021 = vmatpush2.xpose.msra.mxu0 0.0
        %1022 = vmatprep.subr.mxu0 0.0
        %1023 = vmatpush2.xpose.msra.mxu0 0.0
        %1024 = vmatprep.subr.mxu0 0.0
        %1025 = vmatpush2.xpose.msra.mxu0 0.0
        %1026 = vmatprep.subr.mxu0 0.0
        %1027 = vmatpush2.xpose.msra.mxu0 0.0
        %1028 = vmatprep.subr.mxu0 0.0
        %1029 = vmatpush2.xpose.msra.mxu0 0.0
        %1030 = vmatprep.subr.mxu0 0.0
        %1031 = vmatpush2.xpose.msra.mxu0 0.0
        %1032 = vmatprep.subr.mxu0 0.0
        %1033 = vmatpush2.xpose.msra.mxu0 0.0
        %1034 = vmatprep.subr.mxu0 0.0
        %1035 = vmatpush2.xpose.msra.mxu0 0.0
        %1036 = vmatprep.subr.mxu0 0.0
        %1037 = vmatpush2.xpose.msra.mxu0 0.0
        %1038 = vmatprep.subr.mxu0 0.0
        %1039 = vmatpush2.xpose.msra.mxu0 0.0
        %1040 = vmatprep.subr.mxu0 0.0
        %1041 = vmatpush2.xpose.msra.mxu0 0.0
        %1042 = vmatprep.subr.mxu0 0.0
        %1043 = vmatpush2.xpose.msra.mxu0 0.0
        %1044 = vmatprep.subr.mxu0 0.0
        %1045 = vmatpush2.xpose.msra.mxu0 0.0
        %1046 = vmatprep.subr.mxu0 0.0
        %1047 = vmatpush2.xpose.msra.mxu0 0.0
        %1048 = vmatprep.subr.mxu0 0.0
        %1049 = vmatpush2.xpose.msra.mxu0 0.0
        %1050 = vmatprep.mubr.f32.mxu0 0.0
        %1051 = vmatmul.mubr.f32.gmra.mxu0 %v974
        %v1052 = vpop.f32.mrf.mxu0
        %v1053 = vadd.f32 0.0, %v1052
        %v1054 = vpop.f32.mrf.mxu0
        %1055 = vmatprep.mubr.f32.mxu0 0.0
        %1056 = vmatmul.mubr.f32.gmra.mxu0 %v976
        %v1057 = vpop.f32.mrf.mxu0
        %v1058 = vadd.f32 0.0, %v1057
        %v1059 = vpop.f32.mrf.mxu0
        %1060 = vmatprep.mubr.f32.mxu0 0.0
        %1061 = vmatmul.mubr.f32.gmra.mxu0 %v978
        %v1062 = vpop.f32.mrf.mxu0
        %v1063 = vadd.f32 0.0, %v1062
        %v1064 = vpop.f32.mrf.mxu0
        %1065 = vdwg.mxu0
        %1066 = vrot.lane.b32.xlu0 %v442, 96
        %v1067 = vpop.permute.xlu0 %1066
        %1068 = vrot.lane.b32.xlu0 %v444, 96
        %v1069 = vpop.permute.xlu0 %1068
        %1070 = vrot.lane.b32.xlu0 %v446, 96
        %v1071 = vpop.permute.xlu0 %1070
        %v1072 = vsel %vm483, %v442, 0
        %v1074 = vsel %vm483, %v444, 0
        %v1076 = vsel %vm483, %v446, 0
        %v1078 = vsel %vm483, %v1067, 0
        %v1080 = vsel %vm483, %v1069, 0
        %v1082 = vsel %vm483, %v1071, 0
        %1084 = vmatprep.subr.mxu0 0.0
        %1085 = vmatpush1.xpose.msra.mxu0 0.0
        %1086 = vmatprep.subr.mxu0 0.0
        %1087 = vmatpush1.xpose.msra.mxu0 0.0
        %1088 = vmatprep.subr.mxu0 0.0
        %1089 = vmatpush1.xpose.msra.mxu0 0.0
        %1090 = vmatprep.subr.mxu0 0.0
        %1091 = vmatpush1.xpose.msra.mxu0 0.0
        %1092 = vmatprep.subr.mxu0 0.0
        %1093 = vmatpush1.xpose.msra.mxu0 0.0
        %1094 = vmatprep.subr.mxu0 0.0
        %1095 = vmatpush1.xpose.msra.mxu0 0.0
        %1096 = vmatprep.subr.mxu0 0.0
        %1097 = vmatpush1.xpose.msra.mxu0 0.0
        %1098 = vmatprep.subr.mxu0 0.0
        %1099 = vmatpush1.xpose.msra.mxu0 0.0
        %1100 = vmatprep.subr.mxu0 0.0
        %1101 = vmatpush1.xpose.msra.mxu0 0.0
        %1102 = vmatprep.subr.mxu0 0.0
        %1103 = vmatpush1.xpose.msra.mxu0 0.0
        %1104 = vmatprep.subr.mxu0 0.0
        %1105 = vmatpush1.xpose.msra.mxu0 0.0
        %1106 = vmatprep.subr.mxu0 0.0
        %1107 = vmatpush1.xpose.msra.mxu0 0.0
        %1108 = vmatprep.subr.mxu0 0.0
        %1109 = vmatpush1.xpose.msra.mxu0 0.0
        %1110 = vmatprep.subr.mxu0 0.0
        %1111 = vmatpush1.xpose.msra.mxu0 %v1082
        %1112 = vmatprep.subr.mxu0 0.0
        %1113 = vmatpush1.xpose.msra.mxu0 %v1080
        %1114 = vmatprep.subr.mxu0 0.0
        %1115 = vmatpush1.xpose.msra.mxu0 %v1078
        %1116 = vmatprep.subr.mxu0 0.0
        %1117 = vmatpush2.xpose.msra.mxu0 0.0
        %1118 = vmatprep.subr.mxu0 0.0
        %1119 = vmatpush2.xpose.msra.mxu0 0.0
        %1120 = vmatprep.subr.mxu0 0.0
        %1121 = vmatpush2.xpose.msra.mxu0 0.0
        %1122 = vmatprep.subr.mxu0 0.0
        %1123 = vmatpush2.xpose.msra.mxu0 0.0
        %1124 = vmatprep.subr.mxu0 0.0
        %1125 = vmatpush2.xpose.msra.mxu0 0.0
        %1126 = vmatprep.subr.mxu0 0.0
        %1127 = vmatpush2.xpose.msra.mxu0 0.0
        %1128 = vmatprep.subr.mxu0 0.0
        %1129 = vmatpush2.xpose.msra.mxu0 0.0
        %1130 = vmatprep.subr.mxu0 0.0
        %1131 = vmatpush2.xpose.msra.mxu0 0.0
        %1132 = vmatprep.subr.mxu0 0.0
        %1133 = vmatpush2.xpose.msra.mxu0 0.0
        %1134 = vmatprep.subr.mxu0 0.0
        %1135 = vmatpush2.xpose.msra.mxu0 0.0
        %1136 = vmatprep.subr.mxu0 0.0
        %1137 = vmatpush2.xpose.msra.mxu0 0.0
        %1138 = vmatprep.subr.mxu0 0.0
        %1139 = vmatpush2.xpose.msra.mxu0 0.0
        %1140 = vmatprep.subr.mxu0 0.0
        %1141 = vmatpush2.xpose.msra.mxu0 0.0
        %1142 = vmatprep.subr.mxu0 0.0
        %1143 = vmatpush2.xpose.msra.mxu0 0.0
        %1144 = vmatprep.subr.mxu0 0.0
        %1145 = vmatpush2.xpose.msra.mxu0 0.0
        %1146 = vmatprep.subr.mxu0 0.0
        %1147 = vmatpush2.xpose.msra.mxu0 0.0
        %1148 = vmatprep.mubr.f32.mxu0 0.0
        %1149 = vmatmul.mubr.f32.gmra.mxu0 %v1072
        %v1150 = vpop.f32.mrf.mxu0
        %v1151 = vadd.f32 0.0, %v1150
        %v1152 = vpop.f32.mrf.mxu0
        %1153 = vmatprep.mubr.f32.mxu0 0.0
        %1154 = vmatmul.mubr.f32.gmra.mxu0 %v1074
        %v1155 = vpop.f32.mrf.mxu0
        %v1156 = vadd.f32 0.0, %v1155
        %v1157 = vpop.f32.mrf.mxu0
        %1158 = vmatprep.mubr.f32.mxu0 0.0
        %1159 = vmatmul.mubr.f32.gmra.mxu0 %v1076
        %v1160 = vpop.f32.mrf.mxu0
        %v1161 = vadd.f32 0.0, %v1160
        %v1162 = vpop.f32.mrf.mxu0
        %1163 = vdwg.mxu0
        %1164 = vrot.lane.b32.xlu0 %v454, 96
        %v1165 = vpop.permute.xlu0 %1164
        %1166 = vrot.lane.b32.xlu0 %v456, 96
        %v1167 = vpop.permute.xlu0 %1166
        %1168 = vrot.lane.b32.xlu0 %v458, 96
        %v1169 = vpop.permute.xlu0 %1168
        %v1170 = vsel %vm483, %v454, 0
        %v1172 = vsel %vm483, %v456, 0
        %v1174 = vsel %vm483, %v458, 0
        %v1176 = vsel %vm483, %v1165, 0
        %v1178 = vsel %vm483, %v1167, 0
        %v1180 = vsel %vm483, %v1169, 0
        %1182 = vmatprep.subr.mxu0 0.0
        %1183 = vmatpush1.xpose.msra.mxu0 0.0
        %1184 = vmatprep.subr.mxu0 0.0
        %1185 = vmatpush1.xpose.msra.mxu0 0.0
        %1186 = vmatprep.subr.mxu0 0.0
        %1187 = vmatpush1.xpose.msra.mxu0 0.0
        %1188 = vmatprep.subr.mxu0 0.0
        %1189 = vmatpush1.xpose.msra.mxu0 0.0
        %1190 = vmatprep.subr.mxu0 0.0
        %1191 = vmatpush1.xpose.msra.mxu0 0.0
        %1192 = vmatprep.subr.mxu0 0.0
        %1193 = vmatpush1.xpose.msra.mxu0 0.0
        %1194 = vmatprep.subr.mxu0 0.0
        %1195 = vmatpush1.xpose.msra.mxu0 0.0
        %1196 = vmatprep.subr.mxu0 0.0
        %1197 = vmatpush1.xpose.msra.mxu0 0.0
        %1198 = vmatprep.subr.mxu0 0.0
        %1199 = vmatpush1.xpose.msra.mxu0 0.0
        %1200 = vmatprep.subr.mxu0 0.0
        %1201 = vmatpush1.xpose.msra.mxu0 0.0
        %1202 = vmatprep.subr.mxu0 0.0
        %1203 = vmatpush1.xpose.msra.mxu0 0.0
        %1204 = vmatprep.subr.mxu0 0.0
        %1205 = vmatpush1.xpose.msra.mxu0 0.0
        %1206 = vmatprep.subr.mxu0 0.0
        %1207 = vmatpush1.xpose.msra.mxu0 0.0
        %1208 = vmatprep.subr.mxu0 0.0
        %1209 = vmatpush1.xpose.msra.mxu0 %v1180
        %1210 = vmatprep.subr.mxu0 0.0
        %1211 = vmatpush1.xpose.msra.mxu0 %v1178
        %1212 = vmatprep.subr.mxu0 0.0
        %1213 = vmatpush1.xpose.msra.mxu0 %v1176
        %1214 = vmatprep.subr.mxu0 0.0
        %1215 = vmatpush2.xpose.msra.mxu0 0.0
        %1216 = vmatprep.subr.mxu0 0.0
        %1217 = vmatpush2.xpose.msra.mxu0 0.0
        %1218 = vmatprep.subr.mxu0 0.0
        %1219 = vmatpush2.xpose.msra.mxu0 0.0
        %1220 = vmatprep.subr.mxu0 0.0
        %1221 = vmatpush2.xpose.msra.mxu0 0.0
        %1222 = vmatprep.subr.mxu0 0.0
        %1223 = vmatpush2.xpose.msra.mxu0 0.0
        %1224 = vmatprep.subr.mxu0 0.0
        %1225 = vmatpush2.xpose.msra.mxu0 0.0
        %1226 = vmatprep.subr.mxu0 0.0
        %1227 = vmatpush2.xpose.msra.mxu0 0.0
        %1228 = vmatprep.subr.mxu0 0.0
        %1229 = vmatpush2.xpose.msra.mxu0 0.0
        %1230 = vmatprep.subr.mxu0 0.0
        %1231 = vmatpush2.xpose.msra.mxu0 0.0
        %1232 = vmatprep.subr.mxu0 0.0
        %1233 = vmatpush2.xpose.msra.mxu0 0.0
        %1234 = vmatprep.subr.mxu0 0.0
        %1235 = vmatpush2.xpose.msra.mxu0 0.0
        %1236 = vmatprep.subr.mxu0 0.0
        %1237 = vmatpush2.xpose.msra.mxu0 0.0
        %1238 = vmatprep.subr.mxu0 0.0
        %1239 = vmatpush2.xpose.msra.mxu0 0.0
        %1240 = vmatprep.subr.mxu0 0.0
        %1241 = vmatpush2.xpose.msra.mxu0 0.0
        %1242 = vmatprep.subr.mxu0 0.0
        %1243 = vmatpush2.xpose.msra.mxu0 0.0
        %1244 = vmatprep.subr.mxu0 0.0
        %1245 = vmatpush2.xpose.msra.mxu0 0.0
        %1246 = vmatprep.mubr.f32.mxu0 0.0
        %1247 = vmatmul.mubr.f32.gmra.mxu0 %v1170
        %v1248 = vpop.f32.mrf.mxu0
        %v1249 = vadd.f32 0.0, %v1248
        %v1250 = vpop.f32.mrf.mxu0
        %1251 = vmatprep.mubr.f32.mxu0 0.0
        %1252 = vmatmul.mubr.f32.gmra.mxu0 %v1172
        %v1253 = vpop.f32.mrf.mxu0
        %v1254 = vadd.f32 0.0, %v1253
        %v1255 = vpop.f32.mrf.mxu0
        %1256 = vmatprep.mubr.f32.mxu0 0.0
        %1257 = vmatmul.mubr.f32.gmra.mxu0 %v1174
        %v1258 = vpop.f32.mrf.mxu0
        %v1259 = vadd.f32 0.0, %v1258
        %v1260 = vpop.f32.mrf.mxu0
        %1261 = vdwg.mxu0
        %vm1262 = vcmask 195584
        %1263 = vst.msk [vmem:[%s294] sm:$0xff] %vm1262, %v563
        %1264 = vst.msk [vmem:[%s294 + $0x8] sm:$0xff] %vm1262, %v568
        %1265 = vst.msk [vmem:[%s294 + $0x10] sm:$0xff] %vm1262, %v573
        %1266 = vst.msk [vmem:[%s294 + $0x18] sm:$0xff] %vm1262, %v661
        %1267 = vst.msk [vmem:[%s294 + $0x20] sm:$0xff] %vm1262, %v666
        %1268 = vst.msk [vmem:[%s294 + $0x28] sm:$0xff] %vm1262, %v671
        %1269 = vst.msk [vmem:[%s294 + $0x30] sm:$0xff] %vm1262, %v759
        %1270 = vst.msk [vmem:[%s294 + $0x38] sm:$0xff] %vm1262, %v764
        %1271 = vst.msk [vmem:[%s294 + $0x40] sm:$0xff] %vm1262, %v769
        %1272 = vst.msk [vmem:[%s294 + $0x48] sm:$0xff] %vm1262, %v857
        %1273 = vst.msk [vmem:[%s294 + $0x50] sm:$0xff] %vm1262, %v862
        %1274 = vst.msk [vmem:[%s294 + $0x58] sm:$0xff] %vm1262, %v867
        %1275 = vst.msk [vmem:[%s294 + $0x60] sm:$0xff] %vm1262, %v955
        %1276 = vst.msk [vmem:[%s294 + $0x68] sm:$0xff] %vm1262, %v960
        %1277 = vst.msk [vmem:[%s294 + $0x70] sm:$0xff] %vm1262, %v965
        %1278 = vst.msk [vmem:[%s294 + $0x78] sm:$0xff] %vm1262, %v1053
        %1279 = vst.msk [vmem:[%s294 + $0x80] sm:$0xff] %vm1262, %v1058
        %1280 = vst.msk [vmem:[%s294 + $0x88] sm:$0xff] %vm1262, %v1063
        %1281 = vst.msk [vmem:[%s294 + $0x90] sm:$0xff] %vm1262, %v1151
        %1282 = vst.msk [vmem:[%s294 + $0x98] sm:$0xff] %vm1262, %v1156
        %1283 = vst.msk [vmem:[%s294 + $0xa0] sm:$0xff] %vm1262, %v1161
        %1284 = vst.msk [vmem:[%s294 + $0xa8] sm:$0xff] %vm1262, %v1249
        %1285 = vst.msk [vmem:[%s294 + $0xb0] sm:$0xff] %vm1262, %v1254
        %1286 = vst.msk [vmem:[%s294 + $0xb8] sm:$0xff] %vm1262, %v1259
        %v1287 = vmul.f32 %v563, 0.35355338
        %v1288 = vmul.f32 %v568, 0.35355338
        %v1289 = vmul.f32 %v573, 0.35355338
        %v1290 = vmul.f32 %v661, 0.35355338
        %v1291 = vmul.f32 %v666, 0.35355338
        %v1292 = vmul.f32 %v671, 0.35355338
        %v1293 = vmul.f32 %v759, 0.35355338
        %v1294 = vmul.f32 %v764, 0.35355338
        %v1295 = vmul.f32 %v769, 0.35355338
        %v1296 = vmul.f32 %v857, 0.35355338
        %v1297 = vmul.f32 %v862, 0.35355338
        %v1298 = vmul.f32 %v867, 0.35355338
        %v1299 = vmul.f32 %v955, 0.35355338
        %v1300 = vmul.f32 %v960, 0.35355338
        %v1301 = vmul.f32 %v965, 0.35355338
        %v1302 = vmul.f32 %v1053, 0.35355338
        %v1303 = vmul.f32 %v1058, 0.35355338
        %v1304 = vmul.f32 %v1063, 0.35355338
        %v1305 = vmul.f32 %v1151, 0.35355338
        %v1306 = vmul.f32 %v1156, 0.35355338
        %v1307 = vmul.f32 %v1161, 0.35355338
        %v1308 = vmul.f32 %v1249, 0.35355338
        %v1309 = vmul.f32 %v1254, 0.35355338
        %v1310 = vmul.f32 %v1259, 0.35355338
        %v1311 = vld [vmem:[#allocation2] sm:$0xff]
        %v1312 = vld [vmem:[#allocation2 + $0x8] sm:$0xff]
        %v1313 = vld [vmem:[#allocation2 + $0x10] sm:$0xff]
        %v1314 = vld [vmem:[#allocation2 + $0x18] sm:$0xff]
        %v1315 = vld [vmem:[#allocation2 + $0x20] sm:$0xff]
        %v1316 = vld [vmem:[#allocation2 + $0x28] sm:$0xff]
        %v1317 = vld [vmem:[#allocation2 + $0x30] sm:$0xff]
        %v1318 = vld [vmem:[#allocation2 + $0x38] sm:$0xff]
        %v1319 = vld [vmem:[#allocation2 + $0x40] sm:$0xff]
        %v1320 = vld [vmem:[#allocation2 + $0x48] sm:$0xff]
        %v1321 = vld [vmem:[#allocation2 + $0x50] sm:$0xff]
        %v1322 = vld [vmem:[#allocation2 + $0x58] sm:$0xff]
        %v1323 = vld [vmem:[#allocation2 + $0x60] sm:$0xff]
        %v1324 = vld [vmem:[#allocation2 + $0x68] sm:$0xff]
        %v1325 = vld [vmem:[#allocation2 + $0x70] sm:$0xff]
        %v1326 = vld [vmem:[#allocation2 + $0x78] sm:$0xff]
        %v1327 = vld [vmem:[#allocation2 + $0x80] sm:$0xff]
        %v1328 = vld [vmem:[#allocation2 + $0x88] sm:$0xff]
        %v1329 = vld [vmem:[#allocation2 + $0x90] sm:$0xff]
        %v1330 = vld [vmem:[#allocation2 + $0x98] sm:$0xff]
        %v1331 = vld [vmem:[#allocation2 + $0xa0] sm:$0xff]
        %v1332 = vld [vmem:[#allocation2 + $0xa8] sm:$0xff]
        %v1333 = vld [vmem:[#allocation2 + $0xb0] sm:$0xff]
        %v1334 = vld [vmem:[#allocation2 + $0xb8] sm:$0xff]
        %v1335 = vadd.f32 %v1287, %v1311
        %v1336 = vadd.f32 %v1288, %v1312
        %v1337 = vadd.f32 %v1289, %v1313
        %v1338 = vadd.f32 %v1290, %v1314
        %v1339 = vadd.f32 %v1291, %v1315
        %v1340 = vadd.f32 %v1292, %v1316
        %v1341 = vadd.f32 %v1293, %v1317
        %v1342 = vadd.f32 %v1294, %v1318
        %v1343 = vadd.f32 %v1295, %v1319
        %v1344 = vadd.f32 %v1296, %v1320
        %v1345 = vadd.f32 %v1297, %v1321
        %v1346 = vadd.f32 %v1298, %v1322
        %v1347 = vadd.f32 %v1299, %v1323
        %v1348 = vadd.f32 %v1300, %v1324
        %v1349 = vadd.f32 %v1301, %v1325
        %v1350 = vadd.f32 %v1302, %v1326
        %v1351 = vadd.f32 %v1303, %v1327
        %v1352 = vadd.f32 %v1304, %v1328
        %v1353 = vadd.f32 %v1305, %v1329
        %v1354 = vadd.f32 %v1306, %v1330
        %v1355 = vadd.f32 %v1307, %v1331
        %v1356 = vadd.f32 %v1308, %v1332
        %v1357 = vadd.f32 %v1309, %v1333
        %v1358 = vadd.f32 %v1310, %v1334
        %v1359 = vsel %vm1262, %v1335, -inf
        %1360 = vmax.xlane.f32.xlu0 %v1359
        %v1361 = vpop.xlane.xlu0 %1360
        %v1362 = vsel %vm1262, %v1336, -inf
        %1363 = vmax.xlane.f32.xlu0 %v1362
        %v1364 = vpop.xlane.xlu0 %1363
        %v1365 = vsel %vm1262, %v1337, -inf
        %1366 = vmax.xlane.f32.xlu0 %v1365
        %v1367 = vpop.xlane.xlu0 %1366
        %v1368 = vsel %vm1262, %v1338, -inf
        %1369 = vmax.xlane.f32.xlu0 %v1368
        %v1370 = vpop.xlane.xlu0 %1369
        %v1371 = vsel %vm1262, %v1339, -inf
        %1372 = vmax.xlane.f32.xlu0 %v1371
        %v1373 = vpop.xlane.xlu0 %1372
        %v1374 = vsel %vm1262, %v1340, -inf
        %1375 = vmax.xlane.f32.xlu0 %v1374
        %v1376 = vpop.xlane.xlu0 %1375
        %v1377 = vsel %vm1262, %v1341, -inf
        %1378 = vmax.xlane.f32.xlu0 %v1377
        %v1379 = vpop.xlane.xlu0 %1378
        %v1380 = vsel %vm1262, %v1342, -inf
        %1381 = vmax.xlane.f32.xlu0 %v1380
        %v1382 = vpop.xlane.xlu0 %1381
        %v1383 = vsel %vm1262, %v1343, -inf
        %1384 = vmax.xlane.f32.xlu0 %v1383
        %v1385 = vpop.xlane.xlu0 %1384
        %v1386 = vsel %vm1262, %v1344, -inf
        %1387 = vmax.xlane.f32.xlu0 %v1386
        %v1388 = vpop.xlane.xlu0 %1387
        %v1389 = vsel %vm1262, %v1345, -inf
        %1390 = vmax.xlane.f32.xlu0 %v1389
        %v1391 = vpop.xlane.xlu0 %1390
        %v1392 = vsel %vm1262, %v1346, -inf
        %1393 = vmax.xlane.f32.xlu0 %v1392
        %v1394 = vpop.xlane.xlu0 %1393
        %v1395 = vsel %vm1262, %v1347, -inf
        %1396 = vmax.xlane.f32.xlu0 %v1395
        %v1397 = vpop.xlane.xlu0 %1396
        %v1398 = vsel %vm1262, %v1348, -inf
        %1399 = vmax.xlane.f32.xlu0 %v1398
        %v1400 = vpop.xlane.xlu0 %1399
        %v1401 = vsel %vm1262, %v1349, -inf
        %1402 = vmax.xlane.f32.xlu0 %v1401
        %v1403 = vpop.xlane.xlu0 %1402
        %v1404 = vsel %vm1262, %v1350, -inf
        %1405 = vmax.xlane.f32.xlu0 %v1404
        %v1406 = vpop.xlane.xlu0 %1405
        %v1407 = vsel %vm1262, %v1351, -inf
        %1408 = vmax.xlane.f32.xlu0 %v1407
        %v1409 = vpop.xlane.xlu0 %1408
        %v1410 = vsel %vm1262, %v1352, -inf
        %1411 = vmax.xlane.f32.xlu0 %v1410
        %v1412 = vpop.xlane.xlu0 %1411
        %v1413 = vsel %vm1262, %v1353, -inf
        %1414 = vmax.xlane.f32.xlu0 %v1413
        %v1415 = vpop.xlane.xlu0 %1414
        %v1416 = vsel %vm1262, %v1354, -inf
        %1417 = vmax.xlane.f32.xlu0 %v1416
        %v1418 = vpop.xlane.xlu0 %1417
        %v1419 = vsel %vm1262, %v1355, -inf
        %1420 = vmax.xlane.f32.xlu0 %v1419
        %v1421 = vpop.xlane.xlu0 %1420
        %v1422 = vsel %vm1262, %v1356, -inf
        %1423 = vmax.xlane.f32.xlu0 %v1422
        %v1424 = vpop.xlane.xlu0 %1423
        %v1425 = vsel %vm1262, %v1357, -inf
        %1426 = vmax.xlane.f32.xlu0 %v1425
        %v1427 = vpop.xlane.xlu0 %1426
        %v1428 = vsel %vm1262, %v1358, -inf
        %1429 = vmax.xlane.f32.xlu0 %v1428
        %v1430 = vpop.xlane.xlu0 %1429
        %v1431 = vsub.f32 %v1335, %v1361
        %v1432 = vsub.f32 %v1336, %v1364
        %v1433 = vsub.f32 %v1337, %v1367
        %v1434 = vsub.f32 %v1338, %v1370
        %v1435 = vsub.f32 %v1339, %v1373
        %v1436 = vsub.f32 %v1340, %v1376
        %v1437 = vsub.f32 %v1341, %v1379
        %v1438 = vsub.f32 %v1342, %v1382
        %v1439 = vsub.f32 %v1343, %v1385
        %v1440 = vsub.f32 %v1344, %v1388
        %v1441 = vsub.f32 %v1345, %v1391
        %v1442 = vsub.f32 %v1346, %v1394
        %v1443 = vsub.f32 %v1347, %v1397
        %v1444 = vsub.f32 %v1348, %v1400
        %v1445 = vsub.f32 %v1349, %v1403
        %v1446 = vsub.f32 %v1350, %v1406
        %v1447 = vsub.f32 %v1351, %v1409
        %v1448 = vsub.f32 %v1352, %v1412
        %v1449 = vsub.f32 %v1353, %v1415
        %v1450 = vsub.f32 %v1354, %v1418
        %v1451 = vsub.f32 %v1355, %v1421
        %v1452 = vsub.f32 %v1356, %v1424
        %v1453 = vsub.f32 %v1357, %v1427
        %v1454 = vsub.f32 %v1358, %v1430
        %v1455 = vmul.f32 %v1431, 1.442695
        %v1456 = vpow.pop %v1455
        %v1457 = vmul.f32 %v1432, 1.442695
        %v1458 = vpow.pop %v1457
        %v1459 = vmul.f32 %v1433, 1.442695
        %v1460 = vpow.pop %v1459
        %v1461 = vmul.f32 %v1434, 1.442695
        %v1462 = vpow.pop %v1461
        %v1463 = vmul.f32 %v1435, 1.442695
        %v1464 = vpow.pop %v1463
        %v1465 = vmul.f32 %v1436, 1.442695
        %v1466 = vpow.pop %v1465
        %v1467 = vmul.f32 %v1437, 1.442695
        %v1468 = vpow.pop %v1467
        %v1469 = vmul.f32 %v1438, 1.442695
        %v1470 = vpow.pop %v1469
        %v1471 = vmul.f32 %v1439, 1.442695
        %v1472 = vpow.pop %v1471
        %v1473 = vmul.f32 %v1440, 1.442695
        %v1474 = vpow.pop %v1473
        %v1475 = vmul.f32 %v1441, 1.442695
        %v1476 = vpow.pop %v1475
        %v1477 = vmul.f32 %v1442, 1.442695
        %v1478 = vpow.pop %v1477
        %v1479 = vmul.f32 %v1443, 1.442695
        %v1480 = vpow.pop %v1479
        %v1481 = vmul.f32 %v1444, 1.442695
        %v1482 = vpow.pop %v1481
        %v1483 = vmul.f32 %v1445, 1.442695
        %v1484 = vpow.pop %v1483
        %v1485 = vmul.f32 %v1446, 1.442695
        %v1486 = vpow.pop %v1485
        %v1487 = vmul.f32 %v1447, 1.442695
        %v1488 = vpow.pop %v1487
        %v1489 = vmul.f32 %v1448, 1.442695
        %v1490 = vpow.pop %v1489
        %v1491 = vmul.f32 %v1449, 1.442695
        %v1492 = vpow.pop %v1491
        %v1493 = vmul.f32 %v1450, 1.442695
        %v1494 = vpow.pop %v1493
        %v1495 = vmul.f32 %v1451, 1.442695
        %v1496 = vpow.pop %v1495
        %v1497 = vmul.f32 %v1452, 1.442695
        %v1498 = vpow.pop %v1497
        %v1499 = vmul.f32 %v1453, 1.442695
        %v1500 = vpow.pop %v1499
        %v1501 = vmul.f32 %v1454, 1.442695
        %v1502 = vpow.pop %v1501
        %v1503 = vsel %vm1262, %v1456, 0.0
        %1504 = vadd.xlane.f32.xlu0 %v1503
        %v1505 = vpop.xlane.xlu0 %1504
        %v1506 = vsel %vm1262, %v1458, 0.0
        %1507 = vadd.xlane.f32.xlu0 %v1506
        %v1508 = vpop.xlane.xlu0 %1507
        %v1509 = vsel %vm1262, %v1460, 0.0
        %1510 = vadd.xlane.f32.xlu0 %v1509
        %v1511 = vpop.xlane.xlu0 %1510
        %v1512 = vsel %vm1262, %v1462, 0.0
        %1513 = vadd.xlane.f32.xlu0 %v1512
        %v1514 = vpop.xlane.xlu0 %1513
        %v1515 = vsel %vm1262, %v1464, 0.0
        %1516 = vadd.xlane.f32.xlu0 %v1515
        %v1517 = vpop.xlane.xlu0 %1516
        %v1518 = vsel %vm1262, %v1466, 0.0
        %1519 = vadd.xlane.f32.xlu0 %v1518
        %v1520 = vpop.xlane.xlu0 %1519
        %v1521 = vsel %vm1262, %v1468, 0.0
        %1522 = vadd.xlane.f32.xlu0 %v1521
        %v1523 = vpop.xlane.xlu0 %1522
        %v1524 = vsel %vm1262, %v1470, 0.0
        %1525 = vadd.xlane.f32.xlu0 %v1524
        %v1526 = vpop.xlane.xlu0 %1525
        %v1527 = vsel %vm1262, %v1472, 0.0
        %1528 = vadd.xlane.f32.xlu0 %v1527
        %v1529 = vpop.xlane.xlu0 %1528
        %v1530 = vsel %vm1262, %v1474, 0.0
        %1531 = vadd.xlane.f32.xlu0 %v1530
        %v1532 = vpop.xlane.xlu0 %1531
        %v1533 = vsel %vm1262, %v1476, 0.0
        %1534 = vadd.xlane.f32.xlu0 %v1533
        %v1535 = vpop.xlane.xlu0 %1534
        %v1536 = vsel %vm1262, %v1478, 0.0
        %1537 = vadd.xlane.f32.xlu0 %v1536
        %v1538 = vpop.xlane.xlu0 %1537
        %v1539 = vsel %vm1262, %v1480, 0.0
        %1540 = vadd.xlane.f32.xlu0 %v1539
        %v1541 = vpop.xlane.xlu0 %1540
        %v1542 = vsel %vm1262, %v1482, 0.0
        %1543 = vadd.xlane.f32.xlu0 %v1542
        %v1544 = vpop.xlane.xlu0 %1543
        %v1545 = vsel %vm1262, %v1484, 0.0
        %1546 = vadd.xlane.f32.xlu0 %v1545
        %v1547 = vpop.xlane.xlu0 %1546
        %v1548 = vsel %vm1262, %v1486, 0.0
        %1549 = vadd.xlane.f32.xlu0 %v1548
        %v1550 = vpop.xlane.xlu0 %1549
        %v1551 = vsel %vm1262, %v1488, 0.0
        %1552 = vadd.xlane.f32.xlu0 %v1551
        %v1553 = vpop.xlane.xlu0 %1552
        %v1554 = vsel %vm1262, %v1490, 0.0
        %1555 = vadd.xlane.f32.xlu0 %v1554
        %v1556 = vpop.xlane.xlu0 %1555
        %v1557 = vsel %vm1262, %v1492, 0.0
        %1558 = vadd.xlane.f32.xlu0 %v1557
        %v1559 = vpop.xlane.xlu0 %1558
        %v1560 = vsel %vm1262, %v1494, 0.0
        %1561 = vadd.xlane.f32.xlu0 %v1560
        %v1562 = vpop.xlane.xlu0 %1561
        %v1563 = vsel %vm1262, %v1496, 0.0
        %1564 = vadd.xlane.f32.xlu0 %v1563
        %v1565 = vpop.xlane.xlu0 %1564
        %v1566 = vsel %vm1262, %v1498, 0.0
        %1567 = vadd.xlane.f32.xlu0 %v1566
        %v1568 = vpop.xlane.xlu0 %1567
        %v1569 = vsel %vm1262, %v1500, 0.0
        %1570 = vadd.xlane.f32.xlu0 %v1569
        %v1571 = vpop.xlane.xlu0 %1570
        %v1572 = vsel %vm1262, %v1502, 0.0
        %1573 = vadd.xlane.f32.xlu0 %v1572
        %v1574 = vpop.xlane.xlu0 %1573
        %v1575 = vrcp.pop %v1505
        %v1576 = vrcp.pop %v1508
        %v1577 = vrcp.pop %v1511
        %v1578 = vrcp.pop %v1514
        %v1579 = vrcp.pop %v1517
        %v1580 = vrcp.pop %v1520
        %v1581 = vrcp.pop %v1523
        %v1582 = vrcp.pop %v1526
        %v1583 = vrcp.pop %v1529
        %v1584 = vrcp.pop %v1532
        %v1585 = vrcp.pop %v1535
        %v1586 = vrcp.pop %v1538
        %v1587 = vrcp.pop %v1541
        %v1588 = vrcp.pop %v1544
        %v1589 = vrcp.pop %v1547
        %v1590 = vrcp.pop %v1550
        %v1591 = vrcp.pop %v1553
        %v1592 = vrcp.pop %v1556
        %v1593 = vrcp.pop %v1559
        %v1594 = vrcp.pop %v1562
        %v1595 = vrcp.pop %v1565
        %v1596 = vrcp.pop %v1568
        %v1597 = vrcp.pop %v1571
        %v1598 = vrcp.pop %v1574
        %v1599 = vmul.f32 %v1456, %v1575
        %v1600 = vmul.f32 %v1458, %v1576
        %v1601 = vmul.f32 %v1460, %v1577
        %v1602 = vmul.f32 %v1462, %v1578
        %v1603 = vmul.f32 %v1464, %v1579
        %v1604 = vmul.f32 %v1466, %v1580
        %v1605 = vmul.f32 %v1468, %v1581
        %v1606 = vmul.f32 %v1470, %v1582
        %v1607 = vmul.f32 %v1472, %v1583
        %v1608 = vmul.f32 %v1474, %v1584
        %v1609 = vmul.f32 %v1476, %v1585
        %v1610 = vmul.f32 %v1478, %v1586
        %v1611 = vmul.f32 %v1480, %v1587
        %v1612 = vmul.f32 %v1482, %v1588
        %v1613 = vmul.f32 %v1484, %v1589
        %v1614 = vmul.f32 %v1486, %v1590
        %v1615 = vmul.f32 %v1488, %v1591
        %v1616 = vmul.f32 %v1490, %v1592
        %v1617 = vmul.f32 %v1492, %v1593
        %v1618 = vmul.f32 %v1494, %v1594
        %v1619 = vmul.f32 %v1496, %v1595
        %v1620 = vmul.f32 %v1498, %v1596
        %v1621 = vmul.f32 %v1500, %v1597
        %v1622 = vmul.f32 %v1502, %v1598
        %v1623 = vpack.c.bf16 %v1600, %v1599
        %v1624 = vpack.c.bf16 %v1601, %v1601
        %v1625 = vpack.c.bf16 %v1603, %v1602
        %v1626 = vpack.c.bf16 %v1604, %v1604
        %v1627 = vpack.c.bf16 %v1606, %v1605
        %v1628 = vpack.c.bf16 %v1607, %v1607
        %v1629 = vpack.c.bf16 %v1609, %v1608
        %v1630 = vpack.c.bf16 %v1610, %v1610
        %v1631 = vpack.c.bf16 %v1612, %v1611
        %v1632 = vpack.c.bf16 %v1613, %v1613
        %v1633 = vpack.c.bf16 %v1615, %v1614
        %v1634 = vpack.c.bf16 %v1616, %v1616
        %v1635 = vpack.c.bf16 %v1618, %v1617
        %v1636 = vpack.c.bf16 %v1619, %v1619
        %v1637 = vpack.c.bf16 %v1621, %v1620
        %v1638 = vpack.c.bf16 %v1622, %v1622
        %v1639 = vpack.c.bf16 %v398, %v395
        %v1640 = vpack.c.bf16 %v403, %v403
        %v1641 = vpack.c.bf16 %v426, %v424
        %v1642 = vpack.c.bf16 %v428, %v428
        %v1643 = vpack.c.bf16 %v438, %v436
        %v1644 = vpack.c.bf16 %v440, %v440
        %v1645 = vpack.c.bf16 %v450, %v448
        %v1646 = vpack.c.bf16 %v452, %v452
        %v1647 = vpack.c.bf16 %v411, %v406
        %v1648 = vpack.c.bf16 %v414, %v414
        %v1649 = vpack.c.bf16 %v432, %v430
        %v1650 = vpack.c.bf16 %v434, %v434
        %v1651 = vpack.c.bf16 %v444, %v442
        %v1652 = vpack.c.bf16 %v446, %v446
        %v1653 = vpack.c.bf16 %v456, %v454
        %v1654 = vpack.c.bf16 %v458, %v458
        %1657 = vrot.lane.b32.xlu0 %v1639, 64
        %v1658 = vpop.permute.xlu0 %1657
        %1659 = vrot.lane.b32.xlu0 %v1640, 64
        %v1660 = vpop.permute.xlu0 %1659
        %v1663 = vsel %vm1262, %v1623, 0
        %v1666 = vsel %vm1262, %v1624, 0
        %vm1668 = vcmask 1043456
        %v1670 = vsel %vm1668, %v1660, 0
        %1672 = vmatprep.subr.bf16.mxu0 0
        %1673 = vmatpush1.bf16.msra.mxu0 0
        %1674 = vmatprep.subr.bf16.mxu0 0
        %1675 = vmatpush1.bf16.msra.mxu0 0
        %1676 = vmatprep.subr.bf16.mxu0 0
        %1677 = vmatpush1.bf16.msra.mxu0 0
        %1678 = vmatprep.subr.bf16.mxu0 0
        %1679 = vmatpush1.bf16.msra.mxu0 0
        %1680 = vmatprep.subr.bf16.mxu0 0
        %1681 = vmatpush1.bf16.msra.mxu0 0
        %1682 = vmatprep.subr.bf16.mxu0 0
        %1683 = vmatpush1.bf16.msra.mxu0 0
        %1684 = vmatprep.subr.bf16.mxu0 0
        %1685 = vmatpush1.bf16.msra.mxu0 %v1670
        %1686 = vmatprep.subr.bf16.mxu0 0
        %1687 = vmatpush1.bf16.msra.mxu0 %v1658
        %1688 = vmatprep.subr.bf16.mxu0 0
        %1689 = vmatpush2.bf16.msra.mxu0 0
        %1690 = vmatprep.subr.bf16.mxu0 0
        %1691 = vmatpush2.bf16.msra.mxu0 0
        %1692 = vmatprep.subr.bf16.mxu0 0
        %1693 = vmatpush2.bf16.msra.mxu0 0
        %1694 = vmatprep.subr.bf16.mxu0 0
        %1695 = vmatpush2.bf16.msra.mxu0 0
        %1696 = vmatprep.subr.bf16.mxu0 0
        %1697 = vmatpush2.bf16.msra.mxu0 0
        %1698 = vmatprep.subr.bf16.mxu0 0
        %1699 = vmatpush2.bf16.msra.mxu0 0
        %1700 = vmatprep.subr.bf16.mxu0 0
        %1701 = vmatpush2.bf16.msra.mxu0 0
        %1702 = vmatprep.subr.bf16.mxu0 0
        %1703 = vmatpush2.bf16.msra.mxu0 0
        %1704 = vmatprep.mubr.bf16.mxu0 0
        %1705 = vmatmul.mubr.bf16.gmra.mxu0 %v1663
        %v1706 = vpop.f32.mrf.mxu0
        %v1707 = vadd.f32 0.0, %v1706
        %v1708 = vpop.f32.mrf.mxu0
        %v1709 = vpop.f32.mrf.mxu0
        %v1710 = vadd.f32 0.0, %v1709
        %v1711 = vpop.f32.mrf.mxu0
        %1712 = vmatprep.mubr.bf16.mxu0 0
        %1713 = vmatmul.mubr.bf16.gmra.mxu0 %v1666
        %v1714 = vpop.f32.mrf.mxu0
        %v1715 = vadd.f32 0.0, %v1714
        %v1716 = vpop.f32.mrf.mxu0
        %v1717 = vpop.f32.mrf.mxu0
        %v1718 = vpop.f32.mrf.mxu0
        %1719 = vdwg.mxu0
        %1722 = vrot.lane.b32.xlu0 %v1641, 64
        %v1723 = vpop.permute.xlu0 %1722
        %1724 = vrot.lane.b32.xlu0 %v1642, 64
        %v1725 = vpop.permute.xlu0 %1724
        %v1728 = vsel %vm1262, %v1625, 0
        %v1731 = vsel %vm1262, %v1626, 0
        %v1734 = vsel %vm1668, %v1725, 0
        %1736 = vmatprep.subr.bf16.mxu0 0
        %1737 = vmatpush1.bf16.msra.mxu0 0
        %1738 = vmatprep.subr.bf16.mxu0 0
        %1739 = vmatpush1.bf16.msra.mxu0 0
        %1740 = vmatprep.subr.bf16.mxu0 0
        %1741 = vmatpush1.bf16.msra.mxu0 0
        %1742 = vmatprep.subr.bf16.mxu0 0
        %1743 = vmatpush1.bf16.msra.mxu0 0
        %1744 = vmatprep.subr.bf16.mxu0 0
        %1745 = vmatpush1.bf16.msra.mxu0 0
        %1746 = vmatprep.subr.bf16.mxu0 0
        %1747 = vmatpush1.bf16.msra.mxu0 0
        %1748 = vmatprep.subr.bf16.mxu0 0
        %1749 = vmatpush1.bf16.msra.mxu0 %v1734
        %1750 = vmatprep.subr.bf16.mxu0 0
        %1751 = vmatpush1.bf16.msra.mxu0 %v1723
        %1752 = vmatprep.subr.bf16.mxu0 0
        %1753 = vmatpush2.bf16.msra.mxu0 0
        %1754 = vmatprep.subr.bf16.mxu0 0
        %1755 = vmatpush2.bf16.msra.mxu0 0
        %1756 = vmatprep.subr.bf16.mxu0 0
        %1757 = vmatpush2.bf16.msra.mxu0 0
        %1758 = vmatprep.subr.bf16.mxu0 0
        %1759 = vmatpush2.bf16.msra.mxu0 0
        %1760 = vmatprep.subr.bf16.mxu0 0
        %1761 = vmatpush2.bf16.msra.mxu0 0
        %1762 = vmatprep.subr.bf16.mxu0 0
        %1763 = vmatpush2.bf16.msra.mxu0 0
        %1764 = vmatprep.subr.bf16.mxu0 0
        %1765 = vmatpush2.bf16.msra.mxu0 0
        %1766 = vmatprep.subr.bf16.mxu0 0
        %1767 = vmatpush2.bf16.msra.mxu0 0
        %1768 = vmatprep.mubr.bf16.mxu0 0
        %1769 = vmatmul.mubr.bf16.gmra.mxu0 %v1728
        %v1770 = vpop.f32.mrf.mxu0
        %v1771 = vadd.f32 0.0, %v1770
        %v1772 = vpop.f32.mrf.mxu0
        %v1773 = vpop.f32.mrf.mxu0
        %v1774 = vadd.f32 0.0, %v1773
        %v1775 = vpop.f32.mrf.mxu0
        %1776 = vmatprep.mubr.bf16.mxu0 0
        %1777 = vmatmul.mubr.bf16.gmra.mxu0 %v1731
        %v1778 = vpop.f32.mrf.mxu0
        %v1779 = vadd.f32 0.0, %v1778
        %v1780 = vpop.f32.mrf.mxu0
        %v1781 = vpop.f32.mrf.mxu0
        %v1782 = vpop.f32.mrf.mxu0
        %1783 = vdwg.mxu0
        %1786 = vrot.lane.b32.xlu0 %v1643, 64
        %v1787 = vpop.permute.xlu0 %1786
        %1788 = vrot.lane.b32.xlu0 %v1644, 64
        %v1789 = vpop.permute.xlu0 %1788
        %v1792 = vsel %vm1262, %v1627, 0
        %v1795 = vsel %vm1262, %v1628, 0
        %v1798 = vsel %vm1668, %v1789, 0
        %1800 = vmatprep.subr.bf16.mxu0 0
        %1801 = vmatpush1.bf16.msra.mxu0 0
        %1802 = vmatprep.subr.bf16.mxu0 0
        %1803 = vmatpush1.bf16.msra.mxu0 0
        %1804 = vmatprep.subr.bf16.mxu0 0
        %1805 = vmatpush1.bf16.msra.mxu0 0
        %1806 = vmatprep.subr.bf16.mxu0 0
        %1807 = vmatpush1.bf16.msra.mxu0 0
        %1808 = vmatprep.subr.bf16.mxu0 0
        %1809 = vmatpush1.bf16.msra.mxu0 0
        %1810 = vmatprep.subr.bf16.mxu0 0
        %1811 = vmatpush1.bf16.msra.mxu0 0
        %1812 = vmatprep.subr.bf16.mxu0 0
        %1813 = vmatpush1.bf16.msra.mxu0 %v1798
        %1814 = vmatprep.subr.bf16.mxu0 0
        %1815 = vmatpush1.bf16.msra.mxu0 %v1787
        %1816 = vmatprep.subr.bf16.mxu0 0
        %1817 = vmatpush2.bf16.msra.mxu0 0
        %1818 = vmatprep.subr.bf16.mxu0 0
        %1819 = vmatpush2.bf16.msra.mxu0 0
        %1820 = vmatprep.subr.bf16.mxu0 0
        %1821 = vmatpush2.bf16.msra.mxu0 0
        %1822 = vmatprep.subr.bf16.mxu0 0
        %1823 = vmatpush2.bf16.msra.mxu0 0
        %1824 = vmatprep.subr.bf16.mxu0 0
        %1825 = vmatpush2.bf16.msra.mxu0 0
        %1826 = vmatprep.subr.bf16.mxu0 0
        %1827 = vmatpush2.bf16.msra.mxu0 0
        %1828 = vmatprep.subr.bf16.mxu0 0
        %1829 = vmatpush2.bf16.msra.mxu0 0
        %1830 = vmatprep.subr.bf16.mxu0 0
        %1831 = vmatpush2.bf16.msra.mxu0 0
        %1832 = vmatprep.mubr.bf16.mxu0 0
        %1833 = vmatmul.mubr.bf16.gmra.mxu0 %v1792
        %v1834 = vpop.f32.mrf.mxu0
        %v1835 = vadd.f32 0.0, %v1834
        %v1836 = vpop.f32.mrf.mxu0
        %v1837 = vpop.f32.mrf.mxu0
        %v1838 = vadd.f32 0.0, %v1837
        %v1839 = vpop.f32.mrf.mxu0
        %1840 = vmatprep.mubr.bf16.mxu0 0
        %1841 = vmatmul.mubr.bf16.gmra.mxu0 %v1795
        %v1842 = vpop.f32.mrf.mxu0
        %v1843 = vadd.f32 0.0, %v1842
        %v1844 = vpop.f32.mrf.mxu0
        %v1845 = vpop.f32.mrf.mxu0
        %v1846 = vpop.f32.mrf.mxu0
        %1847 = vdwg.mxu0
        %1850 = vrot.lane.b32.xlu0 %v1645, 64
        %v1851 = vpop.permute.xlu0 %1850
        %1852 = vrot.lane.b32.xlu0 %v1646, 64
        %v1853 = vpop.permute.xlu0 %1852
        %v1856 = vsel %vm1262, %v1629, 0
        %v1859 = vsel %vm1262, %v1630, 0
        %v1862 = vsel %vm1668, %v1853, 0
        %1864 = vmatprep.subr.bf16.mxu0 0
        %1865 = vmatpush1.bf16.msra.mxu0 0
        %1866 = vmatprep.subr.bf16.mxu0 0
        %1867 = vmatpush1.bf16.msra.mxu0 0
        %1868 = vmatprep.subr.bf16.mxu0 0
        %1869 = vmatpush1.bf16.msra.mxu0 0
        %1870 = vmatprep.subr.bf16.mxu0 0
        %1871 = vmatpush1.bf16.msra.mxu0 0
        %1872 = vmatprep.subr.bf16.mxu0 0
        %1873 = vmatpush1.bf16.msra.mxu0 0
        %1874 = vmatprep.subr.bf16.mxu0 0
        %1875 = vmatpush1.bf16.msra.mxu0 0
        %1876 = vmatprep.subr.bf16.mxu0 0
        %1877 = vmatpush1.bf16.msra.mxu0 %v1862
        %1878 = vmatprep.subr.bf16.mxu0 0
        %1879 = vmatpush1.bf16.msra.mxu0 %v1851
        %1880 = vmatprep.subr.bf16.mxu0 0
        %1881 = vmatpush2.bf16.msra.mxu0 0
        %1882 = vmatprep.subr.bf16.mxu0 0
        %1883 = vmatpush2.bf16.msra.mxu0 0
        %1884 = vmatprep.subr.bf16.mxu0 0
        %1885 = vmatpush2.bf16.msra.mxu0 0
        %1886 = vmatprep.subr.bf16.mxu0 0
        %1887 = vmatpush2.bf16.msra.mxu0 0
        %1888 = vmatprep.subr.bf16.mxu0 0
        %1889 = vmatpush2.bf16.msra.mxu0 0
        %1890 = vmatprep.subr.bf16.mxu0 0
        %1891 = vmatpush2.bf16.msra.mxu0 0
        %1892 = vmatprep.subr.bf16.mxu0 0
        %1893 = vmatpush2.bf16.msra.mxu0 0
        %1894 = vmatprep.subr.bf16.mxu0 0
        %1895 = vmatpush2.bf16.msra.mxu0 0
        %1896 = vmatprep.mubr.bf16.mxu0 0
        %1897 = vmatmul.mubr.bf16.gmra.mxu0 %v1856
        %v1898 = vpop.f32.mrf.mxu0
        %v1899 = vadd.f32 0.0, %v1898
        %v1900 = vpop.f32.mrf.mxu0
        %v1901 = vpop.f32.mrf.mxu0
        %v1902 = vadd.f32 0.0, %v1901
        %v1903 = vpop.f32.mrf.mxu0
        %1904 = vmatprep.mubr.bf16.mxu0 0
        %1905 = vmatmul.mubr.bf16.gmra.mxu0 %v1859
        %v1906 = vpop.f32.mrf.mxu0
        %v1907 = vadd.f32 0.0, %v1906
        %v1908 = vpop.f32.mrf.mxu0
        %v1909 = vpop.f32.mrf.mxu0
        %v1910 = vpop.f32.mrf.mxu0
        %1911 = vdwg.mxu0
        %1914 = vrot.lane.b32.xlu0 %v1647, 64
        %v1915 = vpop.permute.xlu0 %1914
        %1916 = vrot.lane.b32.xlu0 %v1648, 64
        %v1917 = vpop.permute.xlu0 %1916
        %v1920 = vsel %vm1262, %v1631, 0
        %v1923 = vsel %vm1262, %v1632, 0
        %v1926 = vsel %vm1668, %v1917, 0
        %1928 = vmatprep.subr.bf16.mxu0 0
        %1929 = vmatpush1.bf16.msra.mxu0 0
        %1930 = vmatprep.subr.bf16.mxu0 0
        %1931 = vmatpush1.bf16.msra.mxu0 0
        %1932 = vmatprep.subr.bf16.mxu0 0
        %1933 = vmatpush1.bf16.msra.mxu0 0
        %1934 = vmatprep.subr.bf16.mxu0 0
        %1935 = vmatpush1.bf16.msra.mxu0 0
        %1936 = vmatprep.subr.bf16.mxu0 0
        %1937 = vmatpush1.bf16.msra.mxu0 0
        %1938 = vmatprep.subr.bf16.mxu0 0
        %1939 = vmatpush1.bf16.msra.mxu0 0
        %1940 = vmatprep.subr.bf16.mxu0 0
        %1941 = vmatpush1.bf16.msra.mxu0 %v1926
        %1942 = vmatprep.subr.bf16.mxu0 0
        %1943 = vmatpush1.bf16.msra.mxu0 %v1915
        %1944 = vmatprep.subr.bf16.mxu0 0
        %1945 = vmatpush2.bf16.msra.mxu0 0
        %1946 = vmatprep.subr.bf16.mxu0 0
        %1947 = vmatpush2.bf16.msra.mxu0 0
        %1948 = vmatprep.subr.bf16.mxu0 0
        %1949 = vmatpush2.bf16.msra.mxu0 0
        %1950 = vmatprep.subr.bf16.mxu0 0
        %1951 = vmatpush2.bf16.msra.mxu0 0
        %1952 = vmatprep.subr.bf16.mxu0 0
        %1953 = vmatpush2.bf16.msra.mxu0 0
        %1954 = vmatprep.subr.bf16.mxu0 0
        %1955 = vmatpush2.bf16.msra.mxu0 0
        %1956 = vmatprep.subr.bf16.mxu0 0
        %1957 = vmatpush2.bf16.msra.mxu0 0
        %1958 = vmatprep.subr.bf16.mxu0 0
        %1959 = vmatpush2.bf16.msra.mxu0 0
        %1960 = vmatprep.mubr.bf16.mxu0 0
        %1961 = vmatmul.mubr.bf16.gmra.mxu0 %v1920
        %v1962 = vpop.f32.mrf.mxu0
        %v1963 = vadd.f32 0.0, %v1962
        %v1964 = vpop.f32.mrf.mxu0
        %v1965 = vpop.f32.mrf.mxu0
        %v1966 = vadd.f32 0.0, %v1965
        %v1967 = vpop.f32.mrf.mxu0
        %1968 = vmatprep.mubr.bf16.mxu0 0
        %1969 = vmatmul.mubr.bf16.gmra.mxu0 %v1923
        %v1970 = vpop.f32.mrf.mxu0
        %v1971 = vadd.f32 0.0, %v1970
        %v1972 = vpop.f32.mrf.mxu0
        %v1973 = vpop.f32.mrf.mxu0
        %v1974 = vpop.f32.mrf.mxu0
        %1975 = vdwg.mxu0
        %1978 = vrot.lane.b32.xlu0 %v1649, 64
        %v1979 = vpop.permute.xlu0 %1978
        %1980 = vrot.lane.b32.xlu0 %v1650, 64
        %v1981 = vpop.permute.xlu0 %1980
        %v1984 = vsel %vm1262, %v1633, 0
        %v1987 = vsel %vm1262, %v1634, 0
        %v1990 = vsel %vm1668, %v1981, 0
        %1992 = vmatprep.subr.bf16.mxu0 0
        %1993 = vmatpush1.bf16.msra.mxu0 0
        %1994 = vmatprep.subr.bf16.mxu0 0
        %1995 = vmatpush1.bf16.msra.mxu0 0
        %1996 = vmatprep.subr.bf16.mxu0 0
        %1997 = vmatpush1.bf16.msra.mxu0 0
        %1998 = vmatprep.subr.bf16.mxu0 0
        %1999 = vmatpush1.bf16.msra.mxu0 0
        %2000 = vmatprep.subr.bf16.mxu0 0
        %2001 = vmatpush1.bf16.msra.mxu0 0
        %2002 = vmatprep.subr.bf16.mxu0 0
        %2003 = vmatpush1.bf16.msra.mxu0 0
        %2004 = vmatprep.subr.bf16.mxu0 0
        %2005 = vmatpush1.bf16.msra.mxu0 %v1990
        %2006 = vmatprep.subr.bf16.mxu0 0
        %2007 = vmatpush1.bf16.msra.mxu0 %v1979
        %2008 = vmatprep.subr.bf16.mxu0 0
        %2009 = vmatpush2.bf16.msra.mxu0 0
        %2010 = vmatprep.subr.bf16.mxu0 0
        %2011 = vmatpush2.bf16.msra.mxu0 0
        %2012 = vmatprep.subr.bf16.mxu0 0
        %2013 = vmatpush2.bf16.msra.mxu0 0
        %2014 = vmatprep.subr.bf16.mxu0 0
        %2015 = vmatpush2.bf16.msra.mxu0 0
        %2016 = vmatprep.subr.bf16.mxu0 0
        %2017 = vmatpush2.bf16.msra.mxu0 0
        %2018 = vmatprep.subr.bf16.mxu0 0
        %2019 = vmatpush2.bf16.msra.mxu0 0
        %2020 = vmatprep.subr.bf16.mxu0 0
        %2021 = vmatpush2.bf16.msra.mxu0 0
        %2022 = vmatprep.subr.bf16.mxu0 0
        %2023 = vmatpush2.bf16.msra.mxu0 0
        %2024 = vmatprep.mubr.bf16.mxu0 0
        %2025 = vmatmul.mubr.bf16.gmra.mxu0 %v1984
        %v2026 = vpop.f32.mrf.mxu0
        %v2027 = vadd.f32 0.0, %v2026
        %v2028 = vpop.f32.mrf.mxu0
        %v2029 = vpop.f32.mrf.mxu0
        %v2030 = vadd.f32 0.0, %v2029
        %v2031 = vpop.f32.mrf.mxu0
        %2032 = vmatprep.mubr.bf16.mxu0 0
        %2033 = vmatmul.mubr.bf16.gmra.mxu0 %v1987
        %v2034 = vpop.f32.mrf.mxu0
        %v2035 = vadd.f32 0.0, %v2034
        %v2036 = vpop.f32.mrf.mxu0
        %v2037 = vpop.f32.mrf.mxu0
        %v2038 = vpop.f32.mrf.mxu0
        %2039 = vdwg.mxu0
        %2042 = vrot.lane.b32.xlu0 %v1651, 64
        %v2043 = vpop.permute.xlu0 %2042
        %2044 = vrot.lane.b32.xlu0 %v1652, 64
        %v2045 = vpop.permute.xlu0 %2044
        %v2048 = vsel %vm1262, %v1635, 0
        %v2051 = vsel %vm1262, %v1636, 0
        %v2054 = vsel %vm1668, %v2045, 0
        %2056 = vmatprep.subr.bf16.mxu0 0
        %2057 = vmatpush1.bf16.msra.mxu0 0
        %2058 = vmatprep.subr.bf16.mxu0 0
        %2059 = vmatpush1.bf16.msra.mxu0 0
        %2060 = vmatprep.subr.bf16.mxu0 0
        %2061 = vmatpush1.bf16.msra.mxu0 0
        %2062 = vmatprep.subr.bf16.mxu0 0
        %2063 = vmatpush1.bf16.msra.mxu0 0
        %2064 = vmatprep.subr.bf16.mxu0 0
        %2065 = vmatpush1.bf16.msra.mxu0 0
        %2066 = vmatprep.subr.bf16.mxu0 0
        %2067 = vmatpush1.bf16.msra.mxu0 0
        %2068 = vmatprep.subr.bf16.mxu0 0
        %2069 = vmatpush1.bf16.msra.mxu0 %v2054
        %2070 = vmatprep.subr.bf16.mxu0 0
        %2071 = vmatpush1.bf16.msra.mxu0 %v2043
        %2072 = vmatprep.subr.bf16.mxu0 0
        %2073 = vmatpush2.bf16.msra.mxu0 0
        %2074 = vmatprep.subr.bf16.mxu0 0
        %2075 = vmatpush2.bf16.msra.mxu0 0
        %2076 = vmatprep.subr.bf16.mxu0 0
        %2077 = vmatpush2.bf16.msra.mxu0 0
        %2078 = vmatprep.subr.bf16.mxu0 0
        %2079 = vmatpush2.bf16.msra.mxu0 0
        %2080 = vmatprep.subr.bf16.mxu0 0
        %2081 = vmatpush2.bf16.msra.mxu0 0
        %2082 = vmatprep.subr.bf16.mxu0 0
        %2083 = vmatpush2.bf16.msra.mxu0 0
        %2084 = vmatprep.subr.bf16.mxu0 0
        %2085 = vmatpush2.bf16.msra.mxu0 0
        %2086 = vmatprep.subr.bf16.mxu0 0
        %2087 = vmatpush2.bf16.msra.mxu0 0
        %2088 = vmatprep.mubr.bf16.mxu0 0
        %2089 = vmatmul.mubr.bf16.gmra.mxu0 %v2048
        %v2090 = vpop.f32.mrf.mxu0
        %v2091 = vadd.f32 0.0, %v2090
        %v2092 = vpop.f32.mrf.mxu0
        %v2093 = vpop.f32.mrf.mxu0
        %v2094 = vadd.f32 0.0, %v2093
        %v2095 = vpop.f32.mrf.mxu0
        %2096 = vmatprep.mubr.bf16.mxu0 0
        %2097 = vmatmul.mubr.bf16.gmra.mxu0 %v2051
        %v2098 = vpop.f32.mrf.mxu0
        %v2099 = vadd.f32 0.0, %v2098
        %v2100 = vpop.f32.mrf.mxu0
        %v2101 = vpop.f32.mrf.mxu0
        %v2102 = vpop.f32.mrf.mxu0
        %2103 = vdwg.mxu0
        %2106 = vrot.lane.b32.xlu0 %v1653, 64
        %v2107 = vpop.permute.xlu0 %2106
        %2108 = vrot.lane.b32.xlu0 %v1654, 64
        %v2109 = vpop.permute.xlu0 %2108
        %v2112 = vsel %vm1262, %v1637, 0
        %v2115 = vsel %vm1262, %v1638, 0
        %v2118 = vsel %vm1668, %v2109, 0
        %2120 = vmatprep.subr.bf16.mxu0 0
        %2121 = vmatpush1.bf16.msra.mxu0 0
        %2122 = vmatprep.subr.bf16.mxu0 0
        %2123 = vmatpush1.bf16.msra.mxu0 0
        %2124 = vmatprep.subr.bf16.mxu0 0
        %2125 = vmatpush1.bf16.msra.mxu0 0
        %2126 = vmatprep.subr.bf16.mxu0 0
        %2127 = vmatpush1.bf16.msra.mxu0 0
        %2128 = vmatprep.subr.bf16.mxu0 0
        %2129 = vmatpush1.bf16.msra.mxu0 0
        %2130 = vmatprep.subr.bf16.mxu0 0
        %2131 = vmatpush1.bf16.msra.mxu0 0
        %2132 = vmatprep.subr.bf16.mxu0 0
        %2133 = vmatpush1.bf16.msra.mxu0 %v2118
        %2134 = vmatprep.subr.bf16.mxu0 0
        %2135 = vmatpush1.bf16.msra.mxu0 %v2107
        %2136 = vmatprep.subr.bf16.mxu0 0
        %2137 = vmatpush2.bf16.msra.mxu0 0
        %2138 = vmatprep.subr.bf16.mxu0 0
        %2139 = vmatpush2.bf16.msra.mxu0 0
        %2140 = vmatprep.subr.bf16.mxu0 0
        %2141 = vmatpush2.bf16.msra.mxu0 0
        %2142 = vmatprep.subr.bf16.mxu0 0
        %2143 = vmatpush2.bf16.msra.mxu0 0
        %2144 = vmatprep.subr.bf16.mxu0 0
        %2145 = vmatpush2.bf16.msra.mxu0 0
        %2146 = vmatprep.subr.bf16.mxu0 0
        %2147 = vmatpush2.bf16.msra.mxu0 0
        %2148 = vmatprep.subr.bf16.mxu0 0
        %2149 = vmatpush2.bf16.msra.mxu0 0
        %2150 = vmatprep.subr.bf16.mxu0 0
        %2151 = vmatpush2.bf16.msra.mxu0 0
        %2152 = vmatprep.mubr.bf16.mxu0 0
        %2153 = vmatmul.mubr.bf16.gmra.mxu0 %v2112
        %v2154 = vpop.f32.mrf.mxu0
        %v2155 = vadd.f32 0.0, %v2154
        %v2156 = vpop.f32.mrf.mxu0
        %v2157 = vpop.f32.mrf.mxu0
        %v2158 = vadd.f32 0.0, %v2157
        %v2159 = vpop.f32.mrf.mxu0
        %2160 = vmatprep.mubr.bf16.mxu0 0
        %2161 = vmatmul.mubr.bf16.gmra.mxu0 %v2115
        %v2162 = vpop.f32.mrf.mxu0
        %v2163 = vadd.f32 0.0, %v2162
        %v2164 = vpop.f32.mrf.mxu0
        %v2165 = vpop.f32.mrf.mxu0
        %v2166 = vpop.f32.mrf.mxu0
        %2167 = vdwg.mxu0
        %2174 = vrot.lane.b32.xlu0 %v1771, 8
        %v2175 = vpop.permute.xlu0 %2174
        %2176 = vrot.lane.b32.xlu0 %v1774, 8
        %v2177 = vpop.permute.xlu0 %2176
        %2178 = vrot.lane.b32.xlu0 %v1779, 8
        %v2179 = vpop.permute.xlu0 %2178
        %2180 = vrot.lane.b32.xlu0 %v2027, 8
        %v2181 = vpop.permute.xlu0 %2180
        %2182 = vrot.lane.b32.xlu0 %v2030, 8
        %v2183 = vpop.permute.xlu0 %2182
        %2184 = vrot.lane.b32.xlu0 %v2035, 8
        %v2185 = vpop.permute.xlu0 %2184
        %2198 = vrot.lane.b32.xlu0 %v1835, 16
        %v2199 = vpop.permute.xlu0 %2198
        %2200 = vrot.lane.b32.xlu0 %v1838, 16
        %v2201 = vpop.permute.xlu0 %2200
        %2202 = vrot.lane.b32.xlu0 %v1843, 16
        %v2203 = vpop.permute.xlu0 %2202
        %2204 = vrot.lane.b32.xlu0 %v2091, 16
        %v2205 = vpop.permute.xlu0 %2204
        %2206 = vrot.lane.b32.xlu0 %v2094, 16
        %v2207 = vpop.permute.xlu0 %2206
        %2208 = vrot.lane.b32.xlu0 %v2099, 16
        %v2209 = vpop.permute.xlu0 %2208
        %2222 = vrot.lane.b32.xlu0 %v1899, 24
        %v2223 = vpop.permute.xlu0 %2222
        %2224 = vrot.lane.b32.xlu0 %v1902, 24
        %v2225 = vpop.permute.xlu0 %2224
        %2226 = vrot.lane.b32.xlu0 %v1907, 24
        %v2227 = vpop.permute.xlu0 %2226
        %2228 = vrot.lane.b32.xlu0 %v2155, 24
        %v2229 = vpop.permute.xlu0 %2228
        %2230 = vrot.lane.b32.xlu0 %v2158, 24
        %v2231 = vpop.permute.xlu0 %2230
        %2232 = vrot.lane.b32.xlu0 %v2163, 24
        %v2233 = vpop.permute.xlu0 %2232
        %v2240 = vsel %vm483, %v1707, %v2175
        %v2241 = vsel %vm483, %v1710, %v2177
        %v2242 = vsel %vm483, %v1715, %v2179
        %v2243 = vsel %vm483, %v1963, %v2181
        %v2244 = vsel %vm483, %v1966, %v2183
        %v2245 = vsel %vm483, %v1971, %v2185
        %vm2246 = vcmask 130048
        %v2247 = vsel %vm2246, %v2240, %v2199
        %v2248 = vsel %vm2246, %v2241, %v2201
        %v2249 = vsel %vm2246, %v2242, %v2203
        %v2250 = vsel %vm2246, %v2243, %v2205
        %v2251 = vsel %vm2246, %v2244, %v2207
        %v2252 = vsel %vm2246, %v2245, %v2209
        %v2253 = vsel %vm1262, %v2247, %v2223
        %v2254 = vsel %vm1262, %v2248, %v2225
        %v2255 = vsel %vm1262, %v2249, %v2227
        %v2256 = vsel %vm1262, %v2250, %v2229
        %v2257 = vsel %vm1262, %v2251, %v2231
        %v2258 = vsel %vm1262, %v2252, %v2233
        %v2259 = vpack.c.bf16 %v2254, %v2253
        %v2260 = vpack.c.bf16 %v2256, %v2255
        %v2261 = vpack.c.bf16 %v2258, %v2257
        %v2262 = vld [vmem:[%s4] sm:$0xf]
        %v2263 = vld [vmem:[%s4 + $0x4] sm:$0xf]
        %v2264 = vld [vmem:[%s4 + $0x8] sm:$0xf]
        %v2265 = vld [vmem:[%s4 + $0xc] sm:$0xf]
        %v2266 = vld [vmem:[%s5] sm:$0x1]
        %v2268 = vlaneseq
        %v2269 = vshrl.u32 %v2268, 7
        %v2270 = vsub.s32 0, %v2269
        %v2271 = vrot.slane %v2266, %v2270
        %v2277 = vunpack.c.l.b16 %v2262
        %v2278 = vunpack.c.l.b16 %v2263
        %v2279 = vunpack.c.l.b16 %v2264
        %v2280 = vunpack.c.l.b16 %v2265
        %v2281 = vpack.c.b16 %v2278, %v2277
        %v2282 = vpack.c.b16 %v2280, %v2279
        %v2286 = vsel %vm350, %v2259, 0
        %v2289 = vsel %vm350, %v2260, 0
        %v2292 = vsel %vm350, %v2261, 0
        %2294 = vmatprep.subr.bf16.mxu0 0
        %2295 = vmatpush1.bf16.msra.mxu0 0
        %2296 = vmatprep.subr.bf16.mxu0 0
        %2297 = vmatpush1.bf16.msra.mxu0 0
        %2298 = vmatprep.subr.bf16.mxu0 0
        %2299 = vmatpush1.bf16.msra.mxu0 0
        %2300 = vmatprep.subr.bf16.mxu0 0
        %2301 = vmatpush1.bf16.msra.mxu0 0
        %2302 = vmatprep.subr.bf16.mxu0 0
        %2303 = vmatpush1.bf16.msra.mxu0 0
        %2304 = vmatprep.subr.bf16.mxu0 0
        %2305 = vmatpush1.bf16.msra.mxu0 0
        %2306 = vmatprep.subr.bf16.mxu0 0
        %2307 = vmatpush1.bf16.msra.mxu0 %v2282
        %2308 = vmatprep.subr.bf16.mxu0 0
        %2309 = vmatpush1.bf16.msra.mxu0 %v2281
        %2310 = vmatprep.subr.bf16.mxu0 0
        %2311 = vmatpush2.bf16.msra.mxu0 0
        %2312 = vmatprep.subr.bf16.mxu0 0
        %2313 = vmatpush2.bf16.msra.mxu0 0
        %2314 = vmatprep.subr.bf16.mxu0 0
        %2315 = vmatpush2.bf16.msra.mxu0 0
        %2316 = vmatprep.subr.bf16.mxu0 0
        %2317 = vmatpush2.bf16.msra.mxu0 0
        %2318 = vmatprep.subr.bf16.mxu0 0
        %2319 = vmatpush2.bf16.msra.mxu0 0
        %2320 = vmatprep.subr.bf16.mxu0 0
        %2321 = vmatpush2.bf16.msra.mxu0 0
        %2322 = vmatprep.subr.bf16.mxu0 0
        %2323 = vmatpush2.bf16.msra.mxu0 0
        %2324 = vmatprep.subr.bf16.mxu0 0
        %2325 = vmatpush2.bf16.msra.mxu0 0
        %2326 = vmatprep.mubr.bf16.mxu0 0
        %2327 = vmatmul.mubr.bf16.gmra.mxu0 %v2286
        %v2328 = vpop.f32.mrf.mxu0
        %v2329 = vadd.f32 %v2271, %v2328
        %v2330 = vpop.f32.mrf.mxu0
        %v2331 = vpop.f32.mrf.mxu0
        %v2332 = vadd.f32 %v2271, %v2331
        %v2333 = vpop.f32.mrf.mxu0
        %2334 = vmatprep.mubr.bf16.mxu0 0
        %2335 = vmatmul.mubr.bf16.gmra.mxu0 %v2289
        %v2336 = vpop.f32.mrf.mxu0
        %v2337 = vadd.f32 %v2271, %v2336
        %v2338 = vpop.f32.mrf.mxu0
        %v2339 = vpop.f32.mrf.mxu0
        %v2340 = vadd.f32 %v2271, %v2339
        %v2341 = vpop.f32.mrf.mxu0
        %2342 = vmatprep.mubr.bf16.mxu0 0
        %2343 = vmatmul.mubr.bf16.gmra.mxu0 %v2292
        %v2344 = vpop.f32.mrf.mxu0
        %v2345 = vadd.f32 %v2271, %v2344
        %v2346 = vpop.f32.mrf.mxu0
        %v2347 = vpop.f32.mrf.mxu0
        %v2348 = vadd.f32 %v2271, %v2347
        %v2349 = vpop.f32.mrf.mxu0
        %2350 = vdwg.mxu0
        %2351 = vst.msk [vmem:[%s304] sm:$0xff] %vm350, %v2329
        %2352 = vst.msk [vmem:[%s304 + $0x8] sm:$0xff] %vm350, %v2332
        %2353 = vst.msk [vmem:[%s304 + $0x10] sm:$0xff] %vm350, %v2337
        %2354 = vst.msk [vmem:[%s304 + $0x18] sm:$0xff] %vm350, %v2340
        %2355 = vst.msk [vmem:[%s304 + $0x20] sm:$0xff] %vm350, %v2345
        %2356 = vst.msk [vmem:[%s304 + $0x28] sm:$0xff] %vm350, %v2348
        %p2357 = scmp.lt.s32.totalorder %s23, 1
        %s2358 = scalar_select %p2357, %s23, 1
        %s2359 = smul.addr %s2358, 6
        %s2360 = smul.addr %s2359, 8
        %s2361 = scalar_lea.vmem %s6, %s2360
        %s2362 = sand.u32 %s188, 1
        %s2363 = scalar_lea.sflag [#allocation4], %s2362
        %s2364 = sand.u32 %s188, 1
        %s2365 = smul.addr %s2364, 192
        %s2366 = scalar_lea.vmem [#allocation5], %s2365
        // Predicated region
        $region49: #{tpu_custom_call.1} parent=43 // pred_check
          %p2367 = pneg %p172
        $region50: #{tpu_custom_call.1} parent=43 // pred_check_branch
          %2369 = sbr.rel (%p2367) target = $region52
        $region51: #{tpu_custom_call.1} parent=43 // pred_region
          _
        $region52: #{tpu_custom_call.1} parent=43 // pred_fallthru
          _
        // Predicated region
        $region53: #{tpu_custom_call.1} parent=43 // pred_check
          %p2370 = pneg %p198
        $region54: #{tpu_custom_call.1} parent=43 // pred_check_branch
          %2372 = sbr.rel (%p2370) target = $region56
        $region55: #{tpu_custom_call.1} parent=43 // pred_region
          %s2374 = ssub.s32 3072, 3072
          %2375 = vsyncadd %s2363, %s2374
          %s2376 = smul.addr %s23, 24
          %s2377 = smul.addr %s2376, 128
          %s2378 = scalar_lea.hbm %s7, %s2377
          %s2379 = sshll.u32 %s2366, 4
          %s2380 = int_to_ptr.vmem [resolvable:$true] %s2379
          %2385 = dma.vmem_to_hbm [thread:$0]  %s2380, 3072, %s2378, %s2363, 128, 128, 8
        $region56: #{tpu_custom_call.1} parent=43 // pred_fallthru
          _
      $region44: #{tpu_custom_call.1} parent=5 // pred_fallthru
        _
      %p2386 = scmp.le.s32.totalorder 2, %s18
      // Predicated region
      $region57: #{tpu_custom_call.1} parent=5 // pred_check
        %p2387 = pneg %p2386
      $region58: #{tpu_custom_call.1} parent=5 // pred_check_branch
        %2389 = sbr.rel (%p2387) target = $region60
      $region59: #{tpu_custom_call.1} parent=5 // pred_region
        %s2390 = ssub.s32 %s18, 2
        // Predicated region
        $region61: #{tpu_custom_call.1} parent=59 // pred_check
          %p2391 = pneg %p178
        $region62: #{tpu_custom_call.1} parent=59 // pred_check_branch
          %2393 = sbr.rel (%p2391) target = $region64
        $region63: #{tpu_custom_call.1} parent=59 // pred_region
          %p2394 = scmp.lt.s32.totalorder %s24, 1
          %s2395 = scalar_select %p2394, %s24, 1
          %s2396 = smul.addr %s2395, 6
          %s2397 = smul.addr %s2396, 8
          %s2398 = scalar_lea.vmem %s6, %s2397
        $region64: #{tpu_custom_call.1} parent=59 // pred_fallthru
          _
        // Predicated region
        $region65: #{tpu_custom_call.1} parent=59 // pred_check
          %p2399 = pneg %p204
        $region66: #{tpu_custom_call.1} parent=59 // pred_check_branch
          %2401 = sbr.rel (%p2399) target = $region68
        $region67: #{tpu_custom_call.1} parent=59 // pred_region
          %s2402 = sand.u32 %s189, 1
          %s2403 = scalar_lea.sflag [#allocation4], %s2402
          %s2404 = sand.u32 %s189, 1
          %s2405 = smul.addr %s2404, 192
          %s2406 = scalar_lea.vmem [#allocation5], %s2405
          %2407 = dma.done %s2403, 3072
        $region68: #{tpu_custom_call.1} parent=59 // pred_fallthru
          _
      $region60: #{tpu_custom_call.1} parent=5 // pred_fallthru
        _
    $region6: #{tpu_custom_call.1} parent=1 // loop_footer
      %s22 = sadd.s32 1, %s18
    $region7: #{tpu_custom_call.1} parent=1 // loop_footer_branch
      %17 = sbr.rel target = $region3
    $region8: #{tpu_custom_call.1} parent=1 // loop_exit
      _
    %2408 = vsyncpa [#allocation3], 1
    %s2409 = scalar_lea.sflag [#allocation3], 1
    %2410 = vsyncpa %s2409, 1
    %2411 = vsyncpa [#allocation4], 1
    %s2412 = scalar_lea.sflag [#allocation4], 1
    %2413 = vsyncpa %s2412, 1

</llo_original>
